<compile_context>
chip_gen: v6e
topology: v6e:2x2x1
jax: 0.10.0
libtpu: 0.0.40
codegen_flags: <defaults>
</compile_context>

<pallas_src>
import numpy as np

import jax
import jax.numpy as jnp
from jax import lax
from jax.experimental import pallas as pl
from jax.experimental.pallas import tpu as pltpu


# ----------------------------------------------------------------------------
# Tile planning: VMEM-aware tile_t, megacore-friendly tile_b, padded T.
# ----------------------------------------------------------------------------
def _plan_tiles(T, B, in_size, H, n_gates, *, target_tile_t=64,
                vmem_budget=40 * 2**20):
    # Megacore (v7x, 2 TCs): make grid[0] >= 2 when the batch allows, keeping
    # the batch tile a multiple of 8 sublanes.  Harmless on v5e/v6e (1 TC).
    tile_b = B // 2 if (B >= 16 and B % 16 == 0) else B
    G = n_gates * H

    def vmem_need(tt):
        n = 0
        n += 2 * tt * tile_b * in_size * 2   # x tile (bf16), double-buffered
        n += 2 * tt * tile_b * H * 4         # out tile (<= f32), double-buffered
        n += (in_size + H) * G * 2           # W_ih + W_hh (bf16), single-buffered
        n += (G + H) * 4                     # biases (f32)
        n += 3 * tile_b * H * 4              # h / c carry scratch
        n += 2 * 2 * tile_b * H * 4          # c_n output block
        n += 4 * tile_b * G * 4              # per-step gate intermediates
        return n

    tile_t = max(1, min(target_tile_t, T))
    while tile_t > 1 and vmem_need(tile_t) > vmem_budget:
        tile_t //= 2
    T_pad = -(-T // tile_t) * tile_t         # pad T up; never collapse to tile_t=1
    vmem_limit = int(min(max(2 * vmem_need(tile_t), 32 * 2**20), 56 * 2**20))
    return tile_b, tile_t, T_pad, vmem_limit


# ----------------------------------------------------------------------------
# GRU recurrent kernel with fused input projection.
# grid = (batch_blocks, time_blocks); only h @ W_hh is sequential.
# ----------------------------------------------------------------------------
def _gru_kernel(x_ref, wih_ref, whh_ref, bias_ref, bhhn_ref, out_ref, h_scr):
    t_blk = pl.program_id(1)
    tile_t, tile_b, _ = x_ref.shape
    H = h_scr.shape[-1]

    @pl.when(t_blk == 0)
    def _():
        h_scr[...] = jnp.zeros_like(h_scr)

    wih = wih_ref[...]                                           # (E, 3H) bf16
    whh = whh_ref[...]                                           # (H, 3H) bf16
    bias = jnp.broadcast_to(bias_ref[...], (tile_b, 3 * H))      # hoisted
    bhh_n = jnp.broadcast_to(bhhn_ref[...], (tile_b, H))         # hoisted

    store_bf16 = out_ref.dtype == jnp.bfloat16

    def step(t, carry):
        h, h_bf = carry                                          # f32, bf16
        # Fused input projection (independent of h -> overlaps the recurrence).
        gi = jnp.dot(x_ref[t], wih, preferred_element_type=jnp.float32) + bias
        gh = jnp.dot(h_bf, whh, preferred_element_type=jnp.float32)
        r = jax.nn.sigmoid(gi[:, 0:H] + gh[:, 0:H])
        z = jax.nn.sigmoid(gi[:, H:2 * H] + gh[:, H:2 * H])
        n = jnp.tanh(gi[:, 2 * H:3 * H] + r * (gh[:, 2 * H:3 * H] + bhh_n))
        h_new = (1.0 - z) * n + z * h
        h_new_bf = h_new.astype(jnp.bfloat16)                    # reused as LHS
        if store_bf16:
            out_ref[t] = h_new_bf
        else:
            out_ref[t] = h_new.astype(out_ref.dtype)
        return (h_new, h_new_bf)

    h0 = h_scr[...]
    h_fin, _ = lax.fori_loop(0, tile_t, step, (h0, h0.astype(jnp.bfloat16)),
                             unroll=min(8, tile_t))
    h_scr[...] = h_fin


# ----------------------------------------------------------------------------
# LSTM recurrent kernel with fused input projection.  Padded timesteps (if any)
# are masked so c_n stays exact.
# ----------------------------------------------------------------------------
def _make_lstm_kernel(t_valid, tile_t, needs_mask):
    def kernel(x_ref, wih_ref, whh_ref, bias_ref, out_ref, cn_ref,
               h_scr, c_scr):
        t_blk = pl.program_id(1)
        _, tile_b, _ = x_ref.shape
        H = c_scr.shape[-1]

        @pl.when(t_blk == 0)
        def _():
            h_scr[...] = jnp.zeros_like(h_scr)
            c_scr[...] = jnp.zeros_like(c_scr)

        wih = wih_ref[...]                                       # (E, 4H) bf16
        whh = whh_ref[...]                                       # (H, 4H) bf16
        bias = jnp.broadcast_to(bias_ref[...], (tile_b, 4 * H))  # hoisted

        store_bf16 = out_ref.dtype == jnp.bfloat16

        def step(t, carry):
            h_bf, c = carry                                      # bf16, f32
            g = (jnp.dot(x_ref[t], wih, preferred_element_type=jnp.float32)
                 + bias
                 + jnp.dot(h_bf, whh, preferred_element_type=jnp.float32))
            i = jax.nn.sigmoid(g[:, 0:H])
            f = jax.nn.sigmoid(g[:, H:2 * H])
            gg = jnp.tanh(g[:, 2 * H:3 * H])
            o = jax.nn.sigmoid(g[:, 3 * H:4 * H])
            c_new = f * c + i * gg
            h_new = o * jnp.tanh(c_new)
            if needs_mask:  # trace-time flag; only emitted when T was padded
                valid = (t_blk * tile_t + t) < t_valid
                c_new = jnp.where(valid, c_new, c)
                h_new = jnp.where(valid, h_new, h_bf.astype(jnp.float32))
            h_new_bf = h_new.astype(jnp.bfloat16)                # reused as LHS
            if store_bf16:
                out_ref[t] = h_new_bf
            else:
                out_ref[t] = h_new.astype(out_ref.dtype)
            return (h_new_bf, c_new)

        h_fin_bf, c_fin = lax.fori_loop(0, tile_t, step,
                                        (h_scr[...], c_scr[...]),
                                        unroll=min(8, tile_t))
        h_scr[...] = h_fin_bf
        c_scr[...] = c_fin
        # c_n block is revisited across the time axis; write it every grid step
        # so correctness does not depend on deferred-writeback semantics.
        cn_ref[...] = c_fin.astype(cn_ref.dtype)

    return kernel


# ----------------------------------------------------------------------------
# pallas_call wrappers (single layer recurrences).
# ----------------------------------------------------------------------------
def gru_recurrence(x_bf16, w_ih, w_hh, bias, b_hh_n, *, tile_t, tile_b,
                   out_dtype, vmem_limit):
    T_pad, B, E = x_bf16.shape
    H = w_hh.shape[0]
    G = 3 * H
    assert B % tile_b == 0 and T_pad % tile_t == 0
    grid = (B // tile_b, T_pad // tile_t)
    return pl.pallas_call(
        _gru_kernel,
        out_shape=jax.ShapeDtypeStruct((T_pad, B, H), out_dtype),
        grid_spec=pltpu.PrefetchScalarGridSpec(
            num_scalar_prefetch=0,
            grid=grid,
            in_specs=[
                pl.BlockSpec((tile_t, tile_b, E), lambda b, t: (t, b, 0)),
                # constant-index weights/biases: keep resident, single-buffered
                pl.BlockSpec((E, G), lambda b, t: (0, 0),
                             pipeline_mode=pl.Buffered(1)),
                pl.BlockSpec((H, G), lambda b, t: (0, 0),
                             pipeline_mode=pl.Buffered(1)),
                pl.BlockSpec((1, G), lambda b, t: (0, 0),
                             pipeline_mode=pl.Buffered(1)),
                pl.BlockSpec((1, H), lambda b, t: (0, 0),
                             pipeline_mode=pl.Buffered(1)),
            ],
            out_specs=pl.BlockSpec((tile_t, tile_b, H), lambda b, t: (t, b, 0)),
            scratch_shapes=[pltpu.VMEM((tile_b, H), jnp.float32)],
        ),
        compiler_params=pltpu.CompilerParams(
            dimension_semantics=("parallel", "arbitrary"),
            vmem_limit_bytes=vmem_limit),
    )(x_bf16, w_ih, w_hh, bias, b_hh_n)


def lstm_recurrence(x_bf16, w_ih, w_hh, bias, *, t_valid, tile_t, tile_b,
                    out_dtype, vmem_limit):
    T_pad, B, E = x_bf16.shape
    H = w_hh.shape[0]
    G = 4 * H
    assert B % tile_b == 0 and T_pad % tile_t == 0
    grid = (B // tile_b, T_pad // tile_t)
    kernel = _make_lstm_kernel(t_valid=t_valid, tile_t=tile_t,
                               needs_mask=(T_pad != t_valid))
    return pl.pallas_call(
        kernel,
        out_shape=(jax.ShapeDtypeStruct((T_pad, B, H), out_dtype),
                   jax.ShapeDtypeStruct((B, H), jnp.float32)),
        grid_spec=pltpu.PrefetchScalarGridSpec(
            num_scalar_prefetch=0,
            grid=grid,
            in_specs=[
                pl.BlockSpec((tile_t, tile_b, E), lambda b, t: (t, b, 0)),
                pl.BlockSpec((E, G), lambda b, t: (0, 0),
                             pipeline_mode=pl.Buffered(1)),
                pl.BlockSpec((H, G), lambda b, t: (0, 0),
                             pipeline_mode=pl.Buffered(1)),
                pl.BlockSpec((1, G), lambda b, t: (0, 0),
                             pipeline_mode=pl.Buffered(1)),
            ],
            out_specs=(
                pl.BlockSpec((tile_t, tile_b, H), lambda b, t: (t, b, 0)),
                pl.BlockSpec((tile_b, H), lambda b, t: (b, 0)),
            ),
            scratch_shapes=[pltpu.VMEM((tile_b, H), jnp.bfloat16),   # h carry
                            pltpu.VMEM((tile_b, H), jnp.float32)],   # c carry
        ),
        compiler_params=pltpu.CompilerParams(
            dimension_semantics=("parallel", "arbitrary"),
            vmem_limit_bytes=vmem_limit),
    )(x_bf16, w_ih, w_hh, bias)


# ----------------------------------------------------------------------------
# BaseRNN-equivalent container.
# ----------------------------------------------------------------------------
class BaseRNNPallas:
    RNN_CELL_LSTM = "lstm"
    RNN_CELL_GRU = "gru"

    def __init__(self, vocab_size, h_size, e_size, max_len, rnn_cell,
                 n_layers, dropout_p, key):
        self.n_size = vocab_size
        self.max_len = max_len
        self.h_size = h_size
        self.e_size = e_size
        self.rnn_cell = rnn_cell
        self.n_layers = n_layers
        self.dropout_p = dropout_p  # TODO(synk): dropout is identity (eval mode).

        n_gates = 3 if rnn_cell == self.RNN_CELL_GRU else 4
        k = 1.0 / np.sqrt(h_size)
        self.params = []
        for layer in range(n_layers):
            in_size = e_size if layer == 0 else h_size
            key, k1, k2, k3, k4 = jax.random.split(key, 5)
            # stored pre-transposed (in, nG*H) so matmuls are x @ W; bf16 weights.
            w_ih = jax.random.uniform(k1, (in_size, n_gates * h_size),
                                      jnp.float32, -k, k).astype(jnp.bfloat16)
            w_hh = jax.random.uniform(k2, (h_size, n_gates * h_size),
                                      jnp.float32, -k, k).astype(jnp.bfloat16)
            b_ih = jax.random.uniform(k3, (1, n_gates * h_size), jnp.float32, -k, k)
            b_hh = jax.random.uniform(k4, (1, n_gates * h_size), jnp.float32, -k, k)
            self.params.append((w_ih, w_hh, b_ih, b_hh))

    def _folded_bias(self, b_ih, b_hh):
        H = self.h_size
        if self.rnn_cell == self.RNN_CELL_GRU:
            # r/z biases fold; the n-slice of b_hh must stay inside r*(...).
            return b_ih + jnp.concatenate(
                [b_hh[:, :2 * H], jnp.zeros((1, H), jnp.float32)], axis=1)
        return b_ih + b_hh

    def __call__(self, x):
        # x: [T, B, E] (time-major, already embedded)
        T, B, E = x.shape
        H = self.h_size
        n_gates = 3 if self.rnn_cell == self.RNN_CELL_GRU else 4
        tile_b, tile_t, T_pad, vmem_limit = _plan_tiles(
            T, B, max(E, H), H, n_gates)

        inp = x.astype(jnp.bfloat16)
        if T_pad > T:
            inp = jnp.concatenate(
                [inp, jnp.zeros((T_pad - T, B, E), jnp.bfloat16)], axis=0)

        hns, cns = [], []
        out = None
        for layer in range(self.n_layers):
            w_ih, w_hh, b_ih, b_hh = self.params[layer]
            last = layer == self.n_layers - 1
            out_dtype = jnp.float32 if last else jnp.bfloat16
            bias = self._folded_bias(b_ih, b_hh)
            if self.rnn_cell == self.RNN_CELL_GRU:
                out = gru_recurrence(inp, w_ih, w_hh, bias, b_hh[:, 2 * H:],
                                     tile_t=tile_t, tile_b=tile_b,
                                     out_dtype=out_dtype, vmem_limit=vmem_limit)
            else:
                out, cn = lstm_recurrence(inp, w_ih, w_hh, bias, t_valid=T,
                                          tile_t=tile_t, tile_b=tile_b,
                                          out_dtype=out_dtype,
                                          vmem_limit=vmem_limit)
                cns.append(cn)
            hns.append(out[T - 1].astype(jnp.float32))  # h_n == last real step
            inp = out             # inter-layer dropout omitted (eval mode)
        out = out[:T]
        h_n = jnp.stack(hns, axis=0)
        if self.rnn_cell == self.RNN_CELL_LSTM:
            return out, (h_n, jnp.stack(cns, axis=0))
        return out, h_n

    # Pure-JAX reference (same mixed precision / layer dtypes), PyTorch gates.
    def reference(self, x):
        T, B, _ = x.shape
        H = self.h_size
        hns, cns = [], []
        inp = x
        out = None
        for layer in range(self.n_layers):
            w_ih, w_hh, b_ih, b_hh = self.params[layer]
            last = layer == self.n_layers - 1
            layer_dtype = jnp.float32 if last else jnp.bfloat16
            bias = self._folded_bias(b_ih, b_hh)
            E_in = inp.shape[-1]
            gi = jnp.dot(inp.astype(jnp.bfloat16).reshape(T * B, E_in), w_ih,
                         preferred_element_type=jnp.float32) + bias
            gi = gi.reshape(T, B, -1)
            if self.rnn_cell == self.RNN_CELL_GRU:
                bhh_n = b_hh[:, 2 * H:]

                def gstep(h, gi_t, w_hh=w_hh, bhh_n=bhh_n):
                    gh = jnp.dot(h.astype(jnp.bfloat16), w_hh,
                                 preferred_element_type=jnp.float32)
                    r = jax.nn.sigmoid(gi_t[:, :H] + gh[:, :H])
                    z = jax.nn.sigmoid(gi_t[:, H:2 * H] + gh[:, H:2 * H])
                    n = jnp.tanh(gi_t[:, 2 * H:] + r * (gh[:, 2 * H:] + bhh_n))
                    h_new = (1.0 - z) * n + z * h
                    return h_new, h_new

                _, out_f32 = lax.scan(gstep, jnp.zeros((B, H), jnp.float32), gi)
            else:
                def lstep(carry, gi_t, w_hh=w_hh):
                    h, c = carry
                    g = gi_t + jnp.dot(h.astype(jnp.bfloat16), w_hh,
                                       preferred_element_type=jnp.float32)
                    i = jax.nn.sigmoid(g[:, :H])
                    f = jax.nn.sigmoid(g[:, H:2 * H])
                    gg = jnp.tanh(g[:, 2 * H:3 * H])
                    o = jax.nn.sigmoid(g[:, 3 * H:])
                    c_new = f * c + i * gg
                    h_new = o * jnp.tanh(c_new)
                    return (h_new, c_new), h_new

                (_, cn), out_f32 = lax.scan(
                    lstep, (jnp.zeros((B, H), jnp.float32),
                            jnp.zeros((B, H), jnp.float32)), gi)
                cns.append(cn)
            out = out_f32.astype(layer_dtype)
            hns.append(out[T - 1].astype(jnp.float32))
            inp = out
        h_n = jnp.stack(hns, axis=0)
        if self.rnn_cell == self.RNN_CELL_LSTM:
            return out.astype(jnp.float32), (h_n, jnp.stack(cns, axis=0))
        return out.astype(jnp.float32), h_n


if __name__ == "__main__":
    key = jax.random.PRNGKey(0)
    vocab_size, h_size, e_size, max_len = 50, 32, 32, 8
    n_layers, dropout_p = 2, 0.1
    T, B = max_len, 8

    key, kx, kp_gru, kp_lstm = jax.random.split(key, 4)
    x = jax.random.normal(kx, (T, B, e_size), jnp.float32)   # [T, B, E]

    # ---- GRU variant --------------------------------------------------------
    gru = BaseRNNPallas(vocab_size, h_size, e_size, max_len,
                        BaseRNNPallas.RNN_CELL_GRU, n_layers, dropout_p, kp_gru)
    out_g, hn_g = gru(x)
    jax.block_until_ready((out_g, hn_g))
    out_gr, hn_gr = gru.reference(x)
    np.testing.assert_allclose(np.asarray(out_g), np.asarray(out_gr),
                               rtol=2e-3, atol=2e-3)
    np.testing.assert_allclose(np.asarray(hn_g), np.asarray(hn_gr),
                               rtol=2e-3, atol=2e-3)

    # ---- LSTM variant -------------------------------------------------------
    lstm = BaseRNNPallas(vocab_size, h_size, e_size, max_len,
                         BaseRNNPallas.RNN_CELL_LSTM, n_layers, dropout_p, kp_lstm)
    out_l, (hn_l, cn_l) = lstm(x)
    jax.block_until_ready((out_l, hn_l, cn_l))
    out_lr, (hn_lr, cn_lr) = lstm.reference(x)
    np.testing.assert_allclose(np.asarray(out_l), np.asarray(out_lr),
                               rtol=2e-3, atol=2e-3)
    np.testing.assert_allclose(np.asarray(hn_l), np.asarray(hn_lr),
                               rtol=2e-3, atol=2e-3)
    np.testing.assert_allclose(np.asarray(cn_l), np.asarray(cn_lr),
                               rtol=2e-3, atol=2e-3)

    print("KERNEL_OK")
</pallas_src>

<mosaic_0001>
module attributes {stable_mosaic.version = 11 : i64} {
  func.func @_gru_kernel(%arg0: i32, %arg1: i32, %arg2: memref<8x8x32xbf16, #tpu.memory_space<vmem>>, %arg3: memref<32x96xbf16, #tpu.memory_space<vmem>>, %arg4: memref<32x96xbf16, #tpu.memory_space<vmem>>, %arg5: memref<1x96xf32, #tpu.memory_space<vmem>>, %arg6: memref<1x32xf32, #tpu.memory_space<vmem>>, %arg7: memref<8x8x32xbf16, #tpu.memory_space<vmem>>, %arg8: memref<8x32xf32, #tpu.memory_space<vmem>>) attributes {dimension_semantics = [#tpu.dimension_semantics<parallel>, #tpu.dimension_semantics<arbitrary>], iteration_bounds = array<i64: 1, 1>, scalar_prefetch = 0 : i64, scratch_operands = 1 : i64, tpu.core_type = #tpu.core_type<tc>, window_params = [{transform_indices = @transform_0, window_bounds = array<i64: 8, 8, 32>}, {pipeline_mode = #tpu.pipeline_mode<synchronous>, transform_indices = @transform_1, window_bounds = array<i64: 32, 96>}, {pipeline_mode = #tpu.pipeline_mode<synchronous>, transform_indices = @transform_2, window_bounds = array<i64: 32, 96>}, {pipeline_mode = #tpu.pipeline_mode<synchronous>, transform_indices = @transform_3, window_bounds = array<i64: 1, 96>}, {pipeline_mode = #tpu.pipeline_mode<synchronous>, transform_indices = @transform_4, window_bounds = array<i64: 1, 32>}, {transform_indices = @transform_5, window_bounds = array<i64: 8, 8, 32>}]} {
    %c0_i32 = arith.constant 0 : i32
    %0 = arith.cmpi eq, %arg1, %c0_i32 : i32
    %1 = arith.extui %0 : i1 to i32
    %c0_i32_0 = arith.constant 0 : i32
    %2 = arith.cmpi ne, %1, %c0_i32_0 : i32
    scf.if %2 {
      %cst_84 = arith.constant 0.000000e+00 : f32
      %318 = vector.broadcast %cst_84 : f32 to vector<8x32xf32>
      %c0_85 = arith.constant 0 : index
      %c0_86 = arith.constant 0 : index
      %319 = vector.load %arg8[%c0_85, %c0_86] : memref<8x32xf32, #tpu.memory_space<vmem>>, vector<8x32xf32>
      tpu.vector_store %arg8[%c0_85, %c0_86], %318 {strides = array<i32>} : memref<8x32xf32, #tpu.memory_space<vmem>>, vector<8x32xf32>,
    } else {
    }
    %c0 = arith.constant 0 : index
    %c0_1 = arith.constant 0 : index
    %3 = vector.load %arg3[%c0, %c0_1] : memref<32x96xbf16, #tpu.memory_space<vmem>>, vector<32x96xbf16>
    %c0_2 = arith.constant 0 : index
    %c0_3 = arith.constant 0 : index
    %4 = vector.load %arg4[%c0_2, %c0_3] : memref<32x96xbf16, #tpu.memory_space<vmem>>, vector<32x96xbf16>
    %c0_4 = arith.constant 0 : index
    %c0_5 = arith.constant 0 : index
    %5 = vector.load %arg5[%c0_4, %c0_5] : memref<1x96xf32, #tpu.memory_space<vmem>>, vector<1x96xf32>
    %6 = vector.shape_cast %5 : vector<1x96xf32> to vector<1x96xf32>
    %7 = vector.broadcast %6 : vector<1x96xf32> to vector<8x96xf32>
    %c0_6 = arith.constant 0 : index
    %c0_7 = arith.constant 0 : index
    %8 = vector.load %arg6[%c0_6, %c0_7] : memref<1x32xf32, #tpu.memory_space<vmem>>, vector<1x32xf32>
    %9 = vector.shape_cast %8 : vector<1x32xf32> to vector<1x32xf32>
    %10 = vector.broadcast %9 : vector<1x32xf32> to vector<8x32xf32>
    %c0_8 = arith.constant 0 : index
    %c0_9 = arith.constant 0 : index
    %11 = vector.load %arg8[%c0_8, %c0_9] : memref<8x32xf32, #tpu.memory_space<vmem>>, vector<8x32xf32>
    %12 = arith.truncf %11 : vector<8x32xf32> to vector<8x32xbf16>
    %c0_i32_10 = arith.constant 0 : i32
    %13 = arith.index_cast %c0_i32_10 : i32 to index
    %c0_11 = arith.constant 0 : index
    %c0_12 = arith.constant 0 : index
    %14 = vector.load %arg2[%13, %c0_11, %c0_12] : memref<8x8x32xbf16, #tpu.memory_space<vmem>>, vector<1x8x32xbf16>
    %15 = vector.shape_cast %14 : vector<1x8x32xbf16> to vector<8x32xbf16>
    %cst = arith.constant dense<0.000000e+00> : vector<8x96xf32>
    %16 = tpu.matmul %15, %3, %cst {dimension_numbers = #tpu.dot_dimension_numbers<[1], [0], [0], [1], [0, 0, 1, 1], [], []>} : vector<8x32xbf16>, vector<32x96xbf16>, vector<8x96xf32> -> vector<8x96xf32>
    %17 = arith.addf %16, %7 : vector<8x96xf32>
    %cst_13 = arith.constant dense<0.000000e+00> : vector<8x96xf32>
    %18 = tpu.matmul %12, %4, %cst_13 {dimension_numbers = #tpu.dot_dimension_numbers<[1], [0], [0], [1], [0, 0, 1, 1], [], []>} : vector<8x32xbf16>, vector<32x96xbf16>, vector<8x96xf32> -> vector<8x96xf32>
    %19 = vector.extract_strided_slice %17 {offsets = [0, 0], sizes = [8, 32], strides = [1, 1]} : vector<8x96xf32> to vector<8x32xf32>
    %20 = vector.extract_strided_slice %18 {offsets = [0, 0], sizes = [8, 32], strides = [1, 1]} : vector<8x96xf32> to vector<8x32xf32>
    %21 = arith.addf %19, %20 : vector<8x32xf32>
    %22 = arith.negf %21 : vector<8x32xf32>
    %23 = math.exp %22 : vector<8x32xf32>
    %cst_14 = arith.constant 1.000000e+00 : f32
    %24 = vector.broadcast %cst_14 : f32 to vector<8x32xf32>
    %25 = arith.addf %24, %23 : vector<8x32xf32>
    %26 = arith.divf %24, %25 : vector<8x32xf32>
    %27 = vector.extract_strided_slice %17 {offsets = [0, 32], sizes = [8, 32], strides = [1, 1]} : vector<8x96xf32> to vector<8x32xf32>
    %28 = vector.extract_strided_slice %18 {offsets = [0, 32], sizes = [8, 32], strides = [1, 1]} : vector<8x96xf32> to vector<8x32xf32>
    %29 = arith.addf %27, %28 : vector<8x32xf32>
    %30 = arith.negf %29 : vector<8x32xf32>
    %31 = math.exp %30 : vector<8x32xf32>
    %cst_15 = arith.constant 1.000000e+00 : f32
    %32 = vector.broadcast %cst_15 : f32 to vector<8x32xf32>
    %33 = arith.addf %32, %31 : vector<8x32xf32>
    %34 = arith.divf %32, %33 : vector<8x32xf32>
    %35 = vector.extract_strided_slice %17 {offsets = [0, 64], sizes = [8, 32], strides = [1, 1]} : vector<8x96xf32> to vector<8x32xf32>
    %36 = vector.extract_strided_slice %18 {offsets = [0, 64], sizes = [8, 32], strides = [1, 1]} : vector<8x96xf32> to vector<8x32xf32>
    %37 = arith.addf %36, %10 : vector<8x32xf32>
    %38 = arith.mulf %26, %37 : vector<8x32xf32>
    %39 = arith.addf %35, %38 : vector<8x32xf32>
    %40 = math.tanh %39 : vector<8x32xf32>
    %cst_16 = arith.constant 1.000000e+00 : f32
    %41 = vector.broadcast %cst_16 : f32 to vector<8x32xf32>
    %42 = arith.subf %41, %34 : vector<8x32xf32>
    %43 = arith.mulf %42, %40 : vector<8x32xf32>
    %44 = arith.mulf %34, %11 : vector<8x32xf32>
    %45 = arith.addf %43, %44 : vector<8x32xf32>
    %46 = arith.truncf %45 : vector<8x32xf32> to vector<8x32xbf16>
    %47 = arith.index_cast %c0_i32_10 : i32 to index
    %c0_17 = arith.constant 0 : index
    %c0_18 = arith.constant 0 : index
    %48 = vector.load %arg7[%47, %c0_17, %c0_18] : memref<8x8x32xbf16, #tpu.memory_space<vmem>>, vector<1x8x32xbf16>
    %49 = vector.shape_cast %48 : vector<1x8x32xbf16> to vector<8x32xbf16>
    %50 = vector.shape_cast %46 : vector<8x32xbf16> to vector<1x8x32xbf16>
    tpu.vector_store %arg7[%47, %c0_17, %c0_18], %50 {strides = array<i32>} : memref<8x8x32xbf16, #tpu.memory_space<vmem>>, vector<1x8x32xbf16>,
    %c1_i32 = arith.constant 1 : i32
    %51 = arith.index_cast %c1_i32 : i32 to index
    %c0_19 = arith.constant 0 : index
    %c0_20 = arith.constant 0 : index
    %52 = vector.load %arg2[%51, %c0_19, %c0_20] : memref<8x8x32xbf16, #tpu.memory_space<vmem>>, vector<1x8x32xbf16>
    %53 = vector.shape_cast %52 : vector<1x8x32xbf16> to vector<8x32xbf16>
    %cst_21 = arith.constant dense<0.000000e+00> : vector<8x96xf32>
    %54 = tpu.matmul %53, %3, %cst_21 {dimension_numbers = #tpu.dot_dimension_numbers<[1], [0], [0], [1], [0, 0, 1, 1], [], []>} : vector<8x32xbf16>, vector<32x96xbf16>, vector<8x96xf32> -> vector<8x96xf32>
    %55 = arith.addf %54, %7 : vector<8x96xf32>
    %cst_22 = arith.constant dense<0.000000e+00> : vector<8x96xf32>
    %56 = tpu.matmul %46, %4, %cst_22 {dimension_numbers = #tpu.dot_dimension_numbers<[1], [0], [0], [1], [0, 0, 1, 1], [], []>} : vector<8x32xbf16>, vector<32x96xbf16>, vector<8x96xf32> -> vector<8x96xf32>
    %57 = vector.extract_strided_slice %55 {offsets = [0, 0], sizes = [8, 32], strides = [1, 1]} : vector<8x96xf32> to vector<8x32xf32>
    %58 = vector.extract_strided_slice %56 {offsets = [0, 0], sizes = [8, 32], strides = [1, 1]} : vector<8x96xf32> to vector<8x32xf32>
    %59 = arith.addf %57, %58 : vector<8x32xf32>
    %60 = arith.negf %59 : vector<8x32xf32>
    %61 = math.exp %60 : vector<8x32xf32>
    %cst_23 = arith.constant 1.000000e+00 : f32
    %62 = vector.broadcast %cst_23 : f32 to vector<8x32xf32>
    %63 = arith.addf %62, %61 : vector<8x32xf32>
    %64 = arith.divf %62, %63 : vector<8x32xf32>
    %65 = vector.extract_strided_slice %55 {offsets = [0, 32], sizes = [8, 32], strides = [1, 1]} : vector<8x96xf32> to vector<8x32xf32>
    %66 = vector.extract_strided_slice %56 {offsets = [0, 32], sizes = [8, 32], strides = [1, 1]} : vector<8x96xf32> to vector<8x32xf32>
    %67 = arith.addf %65, %66 : vector<8x32xf32>
    %68 = arith.negf %67 : vector<8x32xf32>
    %69 = math.exp %68 : vector<8x32xf32>
    %cst_24 = arith.constant 1.000000e+00 : f32
    %70 = vector.broadcast %cst_24 : f32 to vector<8x32xf32>
    %71 = arith.addf %70, %69 : vector<8x32xf32>
    %72 = arith.divf %70, %71 : vector<8x32xf32>
    %73 = vector.extract_strided_slice %55 {offsets = [0, 64], sizes = [8, 32], strides = [1, 1]} : vector<8x96xf32> to vector<8x32xf32>
    %74 = vector.extract_strided_slice %56 {offsets = [0, 64], sizes = [8, 32], strides = [1, 1]} : vector<8x96xf32> to vector<8x32xf32>
    %75 = arith.addf %74, %10 : vector<8x32xf32>
    %76 = arith.mulf %64, %75 : vector<8x32xf32>
    %77 = arith.addf %73, %76 : vector<8x32xf32>
    %78 = math.tanh %77 : vector<8x32xf32>
    %cst_25 = arith.constant 1.000000e+00 : f32
    %79 = vector.broadcast %cst_25 : f32 to vector<8x32xf32>
    %80 = arith.subf %79, %72 : vector<8x32xf32>
    %81 = arith.mulf %80, %78 : vector<8x32xf32>
    %82 = arith.mulf %72, %45 : vector<8x32xf32>
    %83 = arith.addf %81, %82 : vector<8x32xf32>
    %84 = arith.truncf %83 : vector<8x32xf32> to vector<8x32xbf16>
    %85 = arith.index_cast %c1_i32 : i32 to index
    %c0_26 = arith.constant 0 : index
    %c0_27 = arith.constant 0 : index
    %86 = vector.load %arg7[%85, %c0_26, %c0_27] : memref<8x8x32xbf16, #tpu.memory_space<vmem>>, vector<1x8x32xbf16>
    %87 = vector.shape_cast %86 : vector<1x8x32xbf16> to vector<8x32xbf16>
    %88 = vector.shape_cast %84 : vector<8x32xbf16> to vector<1x8x32xbf16>
    tpu.vector_store %arg7[%85, %c0_26, %c0_27], %88 {strides = array<i32>} : memref<8x8x32xbf16, #tpu.memory_space<vmem>>, vector<1x8x32xbf16>,
    %c2_i32 = arith.constant 2 : i32
    %89 = arith.index_cast %c2_i32 : i32 to index
    %c0_28 = arith.constant 0 : index
    %c0_29 = arith.constant 0 : index
    %90 = vector.load %arg2[%89, %c0_28, %c0_29] : memref<8x8x32xbf16, #tpu.memory_space<vmem>>, vector<1x8x32xbf16>
    %91 = vector.shape_cast %90 : vector<1x8x32xbf16> to vector<8x32xbf16>
    %cst_30 = arith.constant dense<0.000000e+00> : vector<8x96xf32>
    %92 = tpu.matmul %91, %3, %cst_30 {dimension_numbers = #tpu.dot_dimension_numbers<[1], [0], [0], [1], [0, 0, 1, 1], [], []>} : vector<8x32xbf16>, vector<32x96xbf16>, vector<8x96xf32> -> vector<8x96xf32>
    %93 = arith.addf %92, %7 : vector<8x96xf32>
    %cst_31 = arith.constant dense<0.000000e+00> : vector<8x96xf32>
    %94 = tpu.matmul %84, %4, %cst_31 {dimension_numbers = #tpu.dot_dimension_numbers<[1], [0], [0], [1], [0, 0, 1, 1], [], []>} : vector<8x32xbf16>, vector<32x96xbf16>, vector<8x96xf32> -> vector<8x96xf32>
    %95 = vector.extract_strided_slice %93 {offsets = [0, 0], sizes = [8, 32], strides = [1, 1]} : vector<8x96xf32> to vector<8x32xf32>
    %96 = vector.extract_strided_slice %94 {offsets = [0, 0], sizes = [8, 32], strides = [1, 1]} : vector<8x96xf32> to vector<8x32xf32>
    %97 = arith.addf %95, %96 : vector<8x32xf32>
    %98 = arith.negf %97 : vector<8x32xf32>
    %99 = math.exp %98 : vector<8x32xf32>
    %cst_32 = arith.constant 1.000000e+00 : f32
    %100 = vector.broadcast %cst_32 : f32 to vector<8x32xf32>
    %101 = arith.addf %100, %99 : vector<8x32xf32>
    %102 = arith.divf %100, %101 : vector<8x32xf32>
    %103 = vector.extract_strided_slice %93 {offsets = [0, 32], sizes = [8, 32], strides = [1, 1]} : vector<8x96xf32> to vector<8x32xf32>
    %104 = vector.extract_strided_slice %94 {offsets = [0, 32], sizes = [8, 32], strides = [1, 1]} : vector<8x96xf32> to vector<8x32xf32>
    %105 = arith.addf %103, %104 : vector<8x32xf32>
    %106 = arith.negf %105 : vector<8x32xf32>
    %107 = math.exp %106 : vector<8x32xf32>
    %cst_33 = arith.constant 1.000000e+00 : f32
    %108 = vector.broadcast %cst_33 : f32 to vector<8x32xf32>
    %109 = arith.addf %108, %107 : vector<8x32xf32>
    %110 = arith.divf %108, %109 : vector<8x32xf32>
    %111 = vector.extract_strided_slice %93 {offsets = [0, 64], sizes = [8, 32], strides = [1, 1]} : vector<8x96xf32> to vector<8x32xf32>
    %112 = vector.extract_strided_slice %94 {offsets = [0, 64], sizes = [8, 32], strides = [1, 1]} : vector<8x96xf32> to vector<8x32xf32>
    %113 = arith.addf %112, %10 : vector<8x32xf32>
    %114 = arith.mulf %102, %113 : vector<8x32xf32>
    %115 = arith.addf %111, %114 : vector<8x32xf32>
    %116 = math.tanh %115 : vector<8x32xf32>
    %cst_34 = arith.constant 1.000000e+00 : f32
    %117 = vector.broadcast %cst_34 : f32 to vector<8x32xf32>
    %118 = arith.subf %117, %110 : vector<8x32xf32>
    %119 = arith.mulf %118, %116 : vector<8x32xf32>
    %120 = arith.mulf %110, %83 : vector<8x32xf32>
    %121 = arith.addf %119, %120 : vector<8x32xf32>
    %122 = arith.truncf %121 : vector<8x32xf32> to vector<8x32xbf16>
    %123 = arith.index_cast %c2_i32 : i32 to index
    %c0_35 = arith.constant 0 : index
    %c0_36 = arith.constant 0 : index
    %124 = vector.load %arg7[%123, %c0_35, %c0_36] : memref<8x8x32xbf16, #tpu.memory_space<vmem>>, vector<1x8x32xbf16>
    %125 = vector.shape_cast %124 : vector<1x8x32xbf16> to vector<8x32xbf16>
    %126 = vector.shape_cast %122 : vector<8x32xbf16> to vector<1x8x32xbf16>
    tpu.vector_store %arg7[%123, %c0_35, %c0_36], %126 {strides = array<i32>} : memref<8x8x32xbf16, #tpu.memory_space<vmem>>, vector<1x8x32xbf16>,
    %c3_i32 = arith.constant 3 : i32
    %127 = arith.index_cast %c3_i32 : i32 to index
    %c0_37 = arith.constant 0 : index
    %c0_38 = arith.constant 0 : index
    %128 = vector.load %arg2[%127, %c0_37, %c0_38] : memref<8x8x32xbf16, #tpu.memory_space<vmem>>, vector<1x8x32xbf16>
    %129 = vector.shape_cast %128 : vector<1x8x32xbf16> to vector<8x32xbf16>
    %cst_39 = arith.constant dense<0.000000e+00> : vector<8x96xf32>
    %130 = tpu.matmul %129, %3, %cst_39 {dimension_numbers = #tpu.dot_dimension_numbers<[1], [0], [0], [1], [0, 0, 1, 1], [], []>} : vector<8x32xbf16>, vector<32x96xbf16>, vector<8x96xf32> -> vector<8x96xf32>
    %131 = arith.addf %130, %7 : vector<8x96xf32>
    %cst_40 = arith.constant dense<0.000000e+00> : vector<8x96xf32>
    %132 = tpu.matmul %122, %4, %cst_40 {dimension_numbers = #tpu.dot_dimension_numbers<[1], [0], [0], [1], [0, 0, 1, 1], [], []>} : vector<8x32xbf16>, vector<32x96xbf16>, vector<8x96xf32> -> vector<8x96xf32>
    %133 = vector.extract_strided_slice %131 {offsets = [0, 0], sizes = [8, 32], strides = [1, 1]} : vector<8x96xf32> to vector<8x32xf32>
    %134 = vector.extract_strided_slice %132 {offsets = [0, 0], sizes = [8, 32], strides = [1, 1]} : vector<8x96xf32> to vector<8x32xf32>
    %135 = arith.addf %133, %134 : vector<8x32xf32>
    %136 = arith.negf %135 : vector<8x32xf32>
    %137 = math.exp %136 : vector<8x32xf32>
    %cst_41 = arith.constant 1.000000e+00 : f32
    %138 = vector.broadcast %cst_41 : f32 to vector<8x32xf32>
    %139 = arith.addf %138, %137 : vector<8x32xf32>
    %140 = arith.divf %138, %139 : vector<8x32xf32>
    %141 = vector.extract_strided_slice %131 {offsets = [0, 32], sizes = [8, 32], strides = [1, 1]} : vector<8x96xf32> to vector<8x32xf32>
    %142 = vector.extract_strided_slice %132 {offsets = [0, 32], sizes = [8, 32], strides = [1, 1]} : vector<8x96xf32> to vector<8x32xf32>
    %143 = arith.addf %141, %142 : vector<8x32xf32>
    %144 = arith.negf %143 : vector<8x32xf32>
    %145 = math.exp %144 : vector<8x32xf32>
    %cst_42 = arith.constant 1.000000e+00 : f32
    %146 = vector.broadcast %cst_42 : f32 to vector<8x32xf32>
    %147 = arith.addf %146, %145 : vector<8x32xf32>
    %148 = arith.divf %146, %147 : vector<8x32xf32>
    %149 = vector.extract_strided_slice %131 {offsets = [0, 64], sizes = [8, 32], strides = [1, 1]} : vector<8x96xf32> to vector<8x32xf32>
    %150 = vector.extract_strided_slice %132 {offsets = [0, 64], sizes = [8, 32], strides = [1, 1]} : vector<8x96xf32> to vector<8x32xf32>
    %151 = arith.addf %150, %10 : vector<8x32xf32>
    %152 = arith.mulf %140, %151 : vector<8x32xf32>
    %153 = arith.addf %149, %152 : vector<8x32xf32>
    %154 = math.tanh %153 : vector<8x32xf32>
    %cst_43 = arith.constant 1.000000e+00 : f32
    %155 = vector.broadcast %cst_43 : f32 to vector<8x32xf32>
    %156 = arith.subf %155, %148 : vector<8x32xf32>
    %157 = arith.mulf %156, %154 : vector<8x32xf32>
    %158 = arith.mulf %148, %121 : vector<8x32xf32>
    %159 = arith.addf %157, %158 : vector<8x32xf32>
    %160 = arith.truncf %159 : vector<8x32xf32> to vector<8x32xbf16>
    %161 = arith.index_cast %c3_i32 : i32 to index
    %c0_44 = arith.constant 0 : index
    %c0_45 = arith.constant 0 : index
    %162 = vector.load %arg7[%161, %c0_44, %c0_45] : memref<8x8x32xbf16, #tpu.memory_space<vmem>>, vector<1x8x32xbf16>
    %163 = vector.shape_cast %162 : vector<1x8x32xbf16> to vector<8x32xbf16>
    %164 = vector.shape_cast %160 : vector<8x32xbf16> to vector<1x8x32xbf16>
    tpu.vector_store %arg7[%161, %c0_44, %c0_45], %164 {strides = array<i32>} : memref<8x8x32xbf16, #tpu.memory_space<vmem>>, vector<1x8x32xbf16>,
    %c4_i32 = arith.constant 4 : i32
    %165 = arith.index_cast %c4_i32 : i32 to index
    %c0_46 = arith.constant 0 : index
    %c0_47 = arith.constant 0 : index
    %166 = vector.load %arg2[%165, %c0_46, %c0_47] : memref<8x8x32xbf16, #tpu.memory_space<vmem>>, vector<1x8x32xbf16>
    %167 = vector.shape_cast %166 : vector<1x8x32xbf16> to vector<8x32xbf16>
    %cst_48 = arith.constant dense<0.000000e+00> : vector<8x96xf32>
    %168 = tpu.matmul %167, %3, %cst_48 {dimension_numbers = #tpu.dot_dimension_numbers<[1], [0], [0], [1], [0, 0, 1, 1], [], []>} : vector<8x32xbf16>, vector<32x96xbf16>, vector<8x96xf32> -> vector<8x96xf32>
    %169 = arith.addf %168, %7 : vector<8x96xf32>
    %cst_49 = arith.constant dense<0.000000e+00> : vector<8x96xf32>
    %170 = tpu.matmul %160, %4, %cst_49 {dimension_numbers = #tpu.dot_dimension_numbers<[1], [0], [0], [1], [0, 0, 1, 1], [], []>} : vector<8x32xbf16>, vector<32x96xbf16>, vector<8x96xf32> -> vector<8x96xf32>
    %171 = vector.extract_strided_slice %169 {offsets = [0, 0], sizes = [8, 32], strides = [1, 1]} : vector<8x96xf32> to vector<8x32xf32>
    %172 = vector.extract_strided_slice %170 {offsets = [0, 0], sizes = [8, 32], strides = [1, 1]} : vector<8x96xf32> to vector<8x32xf32>
    %173 = arith.addf %171, %172 : vector<8x32xf32>
    %174 = arith.negf %173 : vector<8x32xf32>
    %175 = math.exp %174 : vector<8x32xf32>
    %cst_50 = arith.constant 1.000000e+00 : f32
    %176 = vector.broadcast %cst_50 : f32 to vector<8x32xf32>
    %177 = arith.addf %176, %175 : vector<8x32xf32>
    %178 = arith.divf %176, %177 : vector<8x32xf32>
    %179 = vector.extract_strided_slice %169 {offsets = [0, 32], sizes = [8, 32], strides = [1, 1]} : vector<8x96xf32> to vector<8x32xf32>
    %180 = vector.extract_strided_slice %170 {offsets = [0, 32], sizes = [8, 32], strides = [1, 1]} : vector<8x96xf32> to vector<8x32xf32>
    %181 = arith.addf %179, %180 : vector<8x32xf32>
    %182 = arith.negf %181 : vector<8x32xf32>
    %183 = math.exp %182 : vector<8x32xf32>
    %cst_51 = arith.constant 1.000000e+00 : f32
    %184 = vector.broadcast %cst_51 : f32 to vector<8x32xf32>
    %185 = arith.addf %184, %183 : vector<8x32xf32>
    %186 = arith.divf %184, %185 : vector<8x32xf32>
    %187 = vector.extract_strided_slice %169 {offsets = [0, 64], sizes = [8, 32], strides = [1, 1]} : vector<8x96xf32> to vector<8x32xf32>
    %188 = vector.extract_strided_slice %170 {offsets = [0, 64], sizes = [8, 32], strides = [1, 1]} : vector<8x96xf32> to vector<8x32xf32>
    %189 = arith.addf %188, %10 : vector<8x32xf32>
    %190 = arith.mulf %178, %189 : vector<8x32xf32>
    %191 = arith.addf %187, %190 : vector<8x32xf32>
    %192 = math.tanh %191 : vector<8x32xf32>
    %cst_52 = arith.constant 1.000000e+00 : f32
    %193 = vector.broadcast %cst_52 : f32 to vector<8x32xf32>
    %194 = arith.subf %193, %186 : vector<8x32xf32>
    %195 = arith.mulf %194, %192 : vector<8x32xf32>
    %196 = arith.mulf %186, %159 : vector<8x32xf32>
    %197 = arith.addf %195, %196 : vector<8x32xf32>
    %198 = arith.truncf %197 : vector<8x32xf32> to vector<8x32xbf16>
    %199 = arith.index_cast %c4_i32 : i32 to index
    %c0_53 = arith.constant 0 : index
    %c0_54 = arith.constant 0 : index
    %200 = vector.load %arg7[%199, %c0_53, %c0_54] : memref<8x8x32xbf16, #tpu.memory_space<vmem>>, vector<1x8x32xbf16>
    %201 = vector.shape_cast %200 : vector<1x8x32xbf16> to vector<8x32xbf16>
    %202 = vector.shape_cast %198 : vector<8x32xbf16> to vector<1x8x32xbf16>
    tpu.vector_store %arg7[%199, %c0_53, %c0_54], %202 {strides = array<i32>} : memref<8x8x32xbf16, #tpu.memory_space<vmem>>, vector<1x8x32xbf16>,
    %c5_i32 = arith.constant 5 : i32
    %203 = arith.index_cast %c5_i32 : i32 to index
    %c0_55 = arith.constant 0 : index
    %c0_56 = arith.constant 0 : index
    %204 = vector.load %arg2[%203, %c0_55, %c0_56] : memref<8x8x32xbf16, #tpu.memory_space<vmem>>, vector<1x8x32xbf16>
    %205 = vector.shape_cast %204 : vector<1x8x32xbf16> to vector<8x32xbf16>
    %cst_57 = arith.constant dense<0.000000e+00> : vector<8x96xf32>
    %206 = tpu.matmul %205, %3, %cst_57 {dimension_numbers = #tpu.dot_dimension_numbers<[1], [0], [0], [1], [0, 0, 1, 1], [], []>} : vector<8x32xbf16>, vector<32x96xbf16>, vector<8x96xf32> -> vector<8x96xf32>
    %207 = arith.addf %206, %7 : vector<8x96xf32>
    %cst_58 = arith.constant dense<0.000000e+00> : vector<8x96xf32>
    %208 = tpu.matmul %198, %4, %cst_58 {dimension_numbers = #tpu.dot_dimension_numbers<[1], [0], [0], [1], [0, 0, 1, 1], [], []>} : vector<8x32xbf16>, vector<32x96xbf16>, vector<8x96xf32> -> vector<8x96xf32>
    %209 = vector.extract_strided_slice %207 {offsets = [0, 0], sizes = [8, 32], strides = [1, 1]} : vector<8x96xf32> to vector<8x32xf32>
    %210 = vector.extract_strided_slice %208 {offsets = [0, 0], sizes = [8, 32], strides = [1, 1]} : vector<8x96xf32> to vector<8x32xf32>
    %211 = arith.addf %209, %210 : vector<8x32xf32>
    %212 = arith.negf %211 : vector<8x32xf32>
    %213 = math.exp %212 : vector<8x32xf32>
    %cst_59 = arith.constant 1.000000e+00 : f32
    %214 = vector.broadcast %cst_59 : f32 to vector<8x32xf32>
    %215 = arith.addf %214, %213 : vector<8x32xf32>
    %216 = arith.divf %214, %215 : vector<8x32xf32>
    %217 = vector.extract_strided_slice %207 {offsets = [0, 32], sizes = [8, 32], strides = [1, 1]} : vector<8x96xf32> to vector<8x32xf32>
    %218 = vector.extract_strided_slice %208 {offsets = [0, 32], sizes = [8, 32], strides = [1, 1]} : vector<8x96xf32> to vector<8x32xf32>
    %219 = arith.addf %217, %218 : vector<8x32xf32>
    %220 = arith.negf %219 : vector<8x32xf32>
    %221 = math.exp %220 : vector<8x32xf32>
    %cst_60 = arith.constant 1.000000e+00 : f32
    %222 = vector.broadcast %cst_60 : f32 to vector<8x32xf32>
    %223 = arith.addf %222, %221 : vector<8x32xf32>
    %224 = arith.divf %222, %223 : vector<8x32xf32>
    %225 = vector.extract_strided_slice %207 {offsets = [0, 64], sizes = [8, 32], strides = [1, 1]} : vector<8x96xf32> to vector<8x32xf32>
    %226 = vector.extract_strided_slice %208 {offsets = [0, 64], sizes = [8, 32], strides = [1, 1]} : vector<8x96xf32> to vector<8x32xf32>
    %227 = arith.addf %226, %10 : vector<8x32xf32>
    %228 = arith.mulf %216, %227 : vector<8x32xf32>
    %229 = arith.addf %225, %228 : vector<8x32xf32>
    %230 = math.tanh %229 : vector<8x32xf32>
    %cst_61 = arith.constant 1.000000e+00 : f32
    %231 = vector.broadcast %cst_61 : f32 to vector<8x32xf32>
    %232 = arith.subf %231, %224 : vector<8x32xf32>
    %233 = arith.mulf %232, %230 : vector<8x32xf32>
    %234 = arith.mulf %224, %197 : vector<8x32xf32>
    %235 = arith.addf %233, %234 : vector<8x32xf32>
    %236 = arith.truncf %235 : vector<8x32xf32> to vector<8x32xbf16>
    %237 = arith.index_cast %c5_i32 : i32 to index
    %c0_62 = arith.constant 0 : index
    %c0_63 = arith.constant 0 : index
    %238 = vector.load %arg7[%237, %c0_62, %c0_63] : memref<8x8x32xbf16, #tpu.memory_space<vmem>>, vector<1x8x32xbf16>
    %239 = vector.shape_cast %238 : vector<1x8x32xbf16> to vector<8x32xbf16>
    %240 = vector.shape_cast %236 : vector<8x32xbf16> to vector<1x8x32xbf16>
    tpu.vector_store %arg7[%237, %c0_62, %c0_63], %240 {strides = array<i32>} : memref<8x8x32xbf16, #tpu.memory_space<vmem>>, vector<1x8x32xbf16>,
    %c6_i32 = arith.constant 6 : i32
    %241 = arith.index_cast %c6_i32 : i32 to index
    %c0_64 = arith.constant 0 : index
    %c0_65 = arith.constant 0 : index
    %242 = vector.load %arg2[%241, %c0_64, %c0_65] : memref<8x8x32xbf16, #tpu.memory_space<vmem>>, vector<1x8x32xbf16>
    %243 = vector.shape_cast %242 : vector<1x8x32xbf16> to vector<8x32xbf16>
    %cst_66 = arith.constant dense<0.000000e+00> : vector<8x96xf32>
    %244 = tpu.matmul %243, %3, %cst_66 {dimension_numbers = #tpu.dot_dimension_numbers<[1], [0], [0], [1], [0, 0, 1, 1], [], []>} : vector<8x32xbf16>, vector<32x96xbf16>, vector<8x96xf32> -> vector<8x96xf32>
    %245 = arith.addf %244, %7 : vector<8x96xf32>
    %cst_67 = arith.constant dense<0.000000e+00> : vector<8x96xf32>
    %246 = tpu.matmul %236, %4, %cst_67 {dimension_numbers = #tpu.dot_dimension_numbers<[1], [0], [0], [1], [0, 0, 1, 1], [], []>} : vector<8x32xbf16>, vector<32x96xbf16>, vector<8x96xf32> -> vector<8x96xf32>
    %247 = vector.extract_strided_slice %245 {offsets = [0, 0], sizes = [8, 32], strides = [1, 1]} : vector<8x96xf32> to vector<8x32xf32>
    %248 = vector.extract_strided_slice %246 {offsets = [0, 0], sizes = [8, 32], strides = [1, 1]} : vector<8x96xf32> to vector<8x32xf32>
    %249 = arith.addf %247, %248 : vector<8x32xf32>
    %250 = arith.negf %249 : vector<8x32xf32>
    %251 = math.exp %250 : vector<8x32xf32>
    %cst_68 = arith.constant 1.000000e+00 : f32
    %252 = vector.broadcast %cst_68 : f32 to vector<8x32xf32>
    %253 = arith.addf %252, %251 : vector<8x32xf32>
    %254 = arith.divf %252, %253 : vector<8x32xf32>
    %255 = vector.extract_strided_slice %245 {offsets = [0, 32], sizes = [8, 32], strides = [1, 1]} : vector<8x96xf32> to vector<8x32xf32>
    %256 = vector.extract_strided_slice %246 {offsets = [0, 32], sizes = [8, 32], strides = [1, 1]} : vector<8x96xf32> to vector<8x32xf32>
    %257 = arith.addf %255, %256 : vector<8x32xf32>
    %258 = arith.negf %257 : vector<8x32xf32>
    %259 = math.exp %258 : vector<8x32xf32>
    %cst_69 = arith.constant 1.000000e+00 : f32
    %260 = vector.broadcast %cst_69 : f32 to vector<8x32xf32>
    %261 = arith.addf %260, %259 : vector<8x32xf32>
    %262 = arith.divf %260, %261 : vector<8x32xf32>
    %263 = vector.extract_strided_slice %245 {offsets = [0, 64], sizes = [8, 32], strides = [1, 1]} : vector<8x96xf32> to vector<8x32xf32>
    %264 = vector.extract_strided_slice %246 {offsets = [0, 64], sizes = [8, 32], strides = [1, 1]} : vector<8x96xf32> to vector<8x32xf32>
    %265 = arith.addf %264, %10 : vector<8x32xf32>
    %266 = arith.mulf %254, %265 : vector<8x32xf32>
    %267 = arith.addf %263, %266 : vector<8x32xf32>
    %268 = math.tanh %267 : vector<8x32xf32>
    %cst_70 = arith.constant 1.000000e+00 : f32
    %269 = vector.broadcast %cst_70 : f32 to vector<8x32xf32>
    %270 = arith.subf %269, %262 : vector<8x32xf32>
    %271 = arith.mulf %270, %268 : vector<8x32xf32>
    %272 = arith.mulf %262, %235 : vector<8x32xf32>
    %273 = arith.addf %271, %272 : vector<8x32xf32>
    %274 = arith.truncf %273 : vector<8x32xf32> to vector<8x32xbf16>
    %275 = arith.index_cast %c6_i32 : i32 to index
    %c0_71 = arith.constant 0 : index
    %c0_72 = arith.constant 0 : index
    %276 = vector.load %arg7[%275, %c0_71, %c0_72] : memref<8x8x32xbf16, #tpu.memory_space<vmem>>, vector<1x8x32xbf16>
    %277 = vector.shape_cast %276 : vector<1x8x32xbf16> to vector<8x32xbf16>
    %278 = vector.shape_cast %274 : vector<8x32xbf16> to vector<1x8x32xbf16>
    tpu.vector_store %arg7[%275, %c0_71, %c0_72], %278 {strides = array<i32>} : memref<8x8x32xbf16, #tpu.memory_space<vmem>>, vector<1x8x32xbf16>,
    %c7_i32 = arith.constant 7 : i32
    %279 = arith.index_cast %c7_i32 : i32 to index
    %c0_73 = arith.constant 0 : index
    %c0_74 = arith.constant 0 : index
    %280 = vector.load %arg2[%279, %c0_73, %c0_74] : memref<8x8x32xbf16, #tpu.memory_space<vmem>>, vector<1x8x32xbf16>
    %281 = vector.shape_cast %280 : vector<1x8x32xbf16> to vector<8x32xbf16>
    %cst_75 = arith.constant dense<0.000000e+00> : vector<8x96xf32>
    %282 = tpu.matmul %281, %3, %cst_75 {dimension_numbers = #tpu.dot_dimension_numbers<[1], [0], [0], [1], [0, 0, 1, 1], [], []>} : vector<8x32xbf16>, vector<32x96xbf16>, vector<8x96xf32> -> vector<8x96xf32>
    %283 = arith.addf %282, %7 : vector<8x96xf32>
    %cst_76 = arith.constant dense<0.000000e+00> : vector<8x96xf32>
    %284 = tpu.matmul %274, %4, %cst_76 {dimension_numbers = #tpu.dot_dimension_numbers<[1], [0], [0], [1], [0, 0, 1, 1], [], []>} : vector<8x32xbf16>, vector<32x96xbf16>, vector<8x96xf32> -> vector<8x96xf32>
    %285 = vector.extract_strided_slice %283 {offsets = [0, 0], sizes = [8, 32], strides = [1, 1]} : vector<8x96xf32> to vector<8x32xf32>
    %286 = vector.extract_strided_slice %284 {offsets = [0, 0], sizes = [8, 32], strides = [1, 1]} : vector<8x96xf32> to vector<8x32xf32>
    %287 = arith.addf %285, %286 : vector<8x32xf32>
    %288 = arith.negf %287 : vector<8x32xf32>
    %289 = math.exp %288 : vector<8x32xf32>
    %cst_77 = arith.constant 1.000000e+00 : f32
    %290 = vector.broadcast %cst_77 : f32 to vector<8x32xf32>
    %291 = arith.addf %290, %289 : vector<8x32xf32>
    %292 = arith.divf %290, %291 : vector<8x32xf32>
    %293 = vector.extract_strided_slice %283 {offsets = [0, 32], sizes = [8, 32], strides = [1, 1]} : vector<8x96xf32> to vector<8x32xf32>
    %294 = vector.extract_strided_slice %284 {offsets = [0, 32], sizes = [8, 32], strides = [1, 1]} : vector<8x96xf32> to vector<8x32xf32>
    %295 = arith.addf %293, %294 : vector<8x32xf32>
    %296 = arith.negf %295 : vector<8x32xf32>
    %297 = math.exp %296 : vector<8x32xf32>
    %cst_78 = arith.constant 1.000000e+00 : f32
    %298 = vector.broadcast %cst_78 : f32 to vector<8x32xf32>
    %299 = arith.addf %298, %297 : vector<8x32xf32>
    %300 = arith.divf %298, %299 : vector<8x32xf32>
    %301 = vector.extract_strided_slice %283 {offsets = [0, 64], sizes = [8, 32], strides = [1, 1]} : vector<8x96xf32> to vector<8x32xf32>
    %302 = vector.extract_strided_slice %284 {offsets = [0, 64], sizes = [8, 32], strides = [1, 1]} : vector<8x96xf32> to vector<8x32xf32>
    %303 = arith.addf %302, %10 : vector<8x32xf32>
    %304 = arith.mulf %292, %303 : vector<8x32xf32>
    %305 = arith.addf %301, %304 : vector<8x32xf32>
    %306 = math.tanh %305 : vector<8x32xf32>
    %cst_79 = arith.constant 1.000000e+00 : f32
    %307 = vector.broadcast %cst_79 : f32 to vector<8x32xf32>
    %308 = arith.subf %307, %300 : vector<8x32xf32>
    %309 = arith.mulf %308, %306 : vector<8x32xf32>
    %310 = arith.mulf %300, %273 : vector<8x32xf32>
    %311 = arith.addf %309, %310 : vector<8x32xf32>
    %312 = arith.truncf %311 : vector<8x32xf32> to vector<8x32xbf16>
    %313 = arith.index_cast %c7_i32 : i32 to index
    %c0_80 = arith.constant 0 : index
    %c0_81 = arith.constant 0 : index
    %314 = vector.load %arg7[%313, %c0_80, %c0_81] : memref<8x8x32xbf16, #tpu.memory_space<vmem>>, vector<1x8x32xbf16>
    %315 = vector.shape_cast %314 : vector<1x8x32xbf16> to vector<8x32xbf16>
    %316 = vector.shape_cast %312 : vector<8x32xbf16> to vector<1x8x32xbf16>
    tpu.vector_store %arg7[%313, %c0_80, %c0_81], %316 {strides = array<i32>} : memref<8x8x32xbf16, #tpu.memory_space<vmem>>, vector<1x8x32xbf16>,
    %c8_i32 = arith.constant 8 : i32
    %c0_82 = arith.constant 0 : index
    %c0_83 = arith.constant 0 : index
    %317 = vector.load %arg8[%c0_82, %c0_83] : memref<8x32xf32, #tpu.memory_space<vmem>>, vector<8x32xf32>
    tpu.vector_store %arg8[%c0_82, %c0_83], %311 {strides = array<i32>} : memref<8x32xf32, #tpu.memory_space<vmem>>, vector<8x32xf32>,
    return
  }
  func.func @transform_0(%arg0: i32, %arg1: i32) -> (i32, i32, i32) {
    %c0_i32 = arith.constant 0 : i32
    %c0_i32_0 = arith.constant 0 : i32
    return %arg1, %arg0, %c0_i32 : i32, i32, i32
  }
  func.func @transform_1(%arg0: i32, %arg1: i32) -> (i32, i32) {
    %c0_i32 = arith.constant 0 : i32
    %c0_i32_0 = arith.constant 0 : i32
    %c0_i32_1 = arith.constant 0 : i32
    return %c0_i32, %c0_i32_0 : i32, i32
  }
  func.func @transform_2(%arg0: i32, %arg1: i32) -> (i32, i32) {
    %c0_i32 = arith.constant 0 : i32
    %c0_i32_0 = arith.constant 0 : i32
    %c0_i32_1 = arith.constant 0 : i32
    return %c0_i32, %c0_i32_0 : i32, i32
  }
  func.func @transform_3(%arg0: i32, %arg1: i32) -> (i32, i32) {
    %c0_i32 = arith.constant 0 : i32
    %c0_i32_0 = arith.constant 0 : i32
    %c0_i32_1 = arith.constant 0 : i32
    return %c0_i32, %c0_i32_0 : i32, i32
  }
  func.func @transform_4(%arg0: i32, %arg1: i32) -> (i32, i32) {
    %c0_i32 = arith.constant 0 : i32
    %c0_i32_0 = arith.constant 0 : i32
    %c0_i32_1 = arith.constant 0 : i32
    return %c0_i32, %c0_i32_0 : i32, i32
  }
  func.func @transform_5(%arg0: i32, %arg1: i32) -> (i32, i32, i32) {
    %c0_i32 = arith.constant 0 : i32
    %c0_i32_0 = arith.constant 0 : i32
    return %arg1, %arg0, %c0_i32 : i32, i32, i32
  }
}

</mosaic_0001>

<llo_original>
// kernel: tpu_custom_call.1
$region0: #{tpu_custom_call.1}
  #allocation0 [shape = 'u32[]', space=smem, size = 0x4, offset = 0x4, fixed_abs, tag = 'smem constant byte address 0x4 - core index']
  #allocation1 [shape = 'u32[144,128]{1,0:T(1,128)}', space=vmem, size = 0x12000, scoped, tag = 'internal scratch']
  #allocation2 [shape = 'f32[8,32]{1,0:T(8,128)}', space=vmem, size = 0x1000, scoped, tag = 'scratch operand']
  %s0 = inlined_call_operand.hbm [shape: bf16[8,8,32], index: 0, kind: input, shape index: {}]
  %s1 = inlined_call_operand.hbm [shape: bf16[32,96], index: 1, kind: input, shape index: {}]
  %s2 = inlined_call_operand.hbm [shape: bf16[32,96], index: 2, kind: input, shape index: {}]
  %s3 = inlined_call_operand.vmem [shape: f32[1,96], index: 3, kind: input, shape index: {}]
  %s4 = inlined_call_operand.vmem [shape: f32[1,32], index: 4, kind: input, shape index: {}]
  %s5 = inlined_call_operand.hbm [shape: bf16[8,8,32], index: 5, kind: output, shape index: {}]
  %s6 = sld [smem:[#allocation0]]
  $region46: #{tpu_custom_call.1} parent=0
    _
  %s8 = ssub.s32 1, %s6
  %s9 = scalar_select 0, %s8, %s6
  $region1: #{tpu_custom_call.1} parent=0
    #allocation3 [shape = 'u8[16384]{0}', space=vmem, size = 0x4000, scoped, tag = 'input window, operand 0, single buffered']
    #allocation4 [shape = 's32[1]{0}', space=sflag, size = 0x4, scoped, tag = 'scoped memory for tpu_custom_call.1']
    #allocation5 [shape = 's32[1]{0}', space=sflag, size = 0x4, scoped, tag = 'scoped memory for tpu_custom_call.1']
    #allocation6 [shape = 'u8[8192]{0}', space=vmem, size = 0x2000, scoped, tag = 'input window, operand 1, single buffered']
    #allocation7 [shape = 's32[1]{0}', space=sflag, size = 0x4, scoped, tag = 'scoped memory for tpu_custom_call.1']
    #allocation8 [shape = 'u8[8192]{0}', space=vmem, size = 0x2000, scoped, tag = 'input window, operand 2, single buffered']
    #allocation9 [shape = 'u8[16384]{0}', space=vmem, size = 0x4000, scoped, tag = 'output window, operand 0, single buffered']
    %10 = vsyncpa [#allocation4], 0
    %11 = vsyncpa [#allocation7], 0
    %12 = vsyncpa [#allocation5], 0
    // Predicated region
    $region2: #{tpu_custom_call.1} parent=1 // pred_check
      _
    $region3: #{tpu_custom_call.1} parent=1 // pred_check_branch
      %14 = sbr.rel (0) target = $region5
    $region4: #{tpu_custom_call.1} parent=1 // pred_region
      %s16 = ssub.s32 512, 512
      %17 = vsyncadd [#allocation4], %s16
      %s18 = sshll.u32 [#allocation3], 4
      %s19 = int_to_ptr.vmem [resolvable:$true] %s18
      %24 = dma.hbm_to_vmem [thread:$0]  %s0, 512, %s19, [#allocation4], 64, 64, 4
    $region5: #{tpu_custom_call.1} parent=1 // pred_fallthru
      _
    // Predicated region
    $region6: #{tpu_custom_call.1} parent=1 // pred_check
      _
    $region7: #{tpu_custom_call.1} parent=1 // pred_check_branch
      %26 = sbr.rel (0) target = $region9
    $region8: #{tpu_custom_call.1} parent=1 // pred_region
      %s28 = ssub.s32 256, 256
      %29 = vsyncadd [#allocation7], %s28
      %s30 = sshll.u32 [#allocation6], 4
      %s31 = int_to_ptr.vmem [resolvable:$true] %s30
      %36 = dma.hbm_to_vmem [thread:$0]  %s1, 256, %s31, [#allocation7], 64, 64, 4
    $region9: #{tpu_custom_call.1} parent=1 // pred_fallthru
      _
    // Predicated region
    $region10: #{tpu_custom_call.1} parent=1 // pred_check
      _
    $region11: #{tpu_custom_call.1} parent=1 // pred_check_branch
      %38 = sbr.rel (0) target = $region13
    $region12: #{tpu_custom_call.1} parent=1 // pred_region
      %s40 = ssub.s32 256, 256
      %41 = vsyncadd [#allocation7], %s40
      %s42 = sshll.u32 [#allocation8], 4
      %s43 = int_to_ptr.vmem [resolvable:$true] %s42
      %48 = dma.hbm_to_vmem [thread:$0]  %s2, 256, %s43, [#allocation7], 64, 64, 4
    $region13: #{tpu_custom_call.1} parent=1 // pred_fallthru
      _
    // Predicated region
    $region14: #{tpu_custom_call.1} parent=1 // pred_check
      _
    $region15: #{tpu_custom_call.1} parent=1 // pred_check_branch
      %50 = sbr.rel (0) target = $region17
    $region16: #{tpu_custom_call.1} parent=1 // pred_region
      _
    $region17: #{tpu_custom_call.1} parent=1 // pred_fallthru
      _
    // Predicated region
    $region18: #{tpu_custom_call.1} parent=1 // pred_check
      _
    $region19: #{tpu_custom_call.1} parent=1 // pred_check_branch
      %52 = sbr.rel (0) target = $region21
    $region20: #{tpu_custom_call.1} parent=1 // pred_region
      _
    $region21: #{tpu_custom_call.1} parent=1 // pred_fallthru
      _
    // Predicated region
    $region22: #{tpu_custom_call.1} parent=1 // pred_check
      _
    $region23: #{tpu_custom_call.1} parent=1 // pred_check_branch
      %54 = sbr.rel (0) target = $region25
    $region24: #{tpu_custom_call.1} parent=1 // pred_region
      %55 = dma.done [#allocation4], 512
    $region25: #{tpu_custom_call.1} parent=1 // pred_fallthru
      _
    // Predicated region
    $region26: #{tpu_custom_call.1} parent=1 // pred_check
      _
    $region27: #{tpu_custom_call.1} parent=1 // pred_check_branch
      %57 = sbr.rel (0) target = $region29
    $region28: #{tpu_custom_call.1} parent=1 // pred_region
      %58 = dma.done [#allocation7], 256
    $region29: #{tpu_custom_call.1} parent=1 // pred_fallthru
      _
    // Predicated region
    $region30: #{tpu_custom_call.1} parent=1 // pred_check
      _
    $region31: #{tpu_custom_call.1} parent=1 // pred_check_branch
      %60 = sbr.rel (0) target = $region33
    $region32: #{tpu_custom_call.1} parent=1 // pred_region
      %61 = dma.done [#allocation7], 256
    $region33: #{tpu_custom_call.1} parent=1 // pred_fallthru
      _
    %p63 = scmp.eq.s32.totalorder 0, 0
    // Predicated region
    $region34: #{tpu_custom_call.1} parent=1 // pred_check
      %p64 = pneg %p63
    $region35: #{tpu_custom_call.1} parent=1 // pred_check_branch
      %66 = sbr.rel (%p64) target = $region37
    $region36: #{tpu_custom_call.1} parent=1 // pred_region
      %vm67 = vcmask 261120
      %68 = vst.msk [vmem:[#allocation2] sm:$0xff] %vm67, 0.0
    $region37: #{tpu_custom_call.1} parent=1 // pred_fallthru
      _
    %v69 = vld [vmem:[#allocation6] sm:$0xf]
    %v70 = vld [vmem:[#allocation6 + $0x4] sm:$0xf]
    %v71 = vld [vmem:[#allocation6 + $0x8] sm:$0xf]
    %v72 = vld [vmem:[#allocation6 + $0xc] sm:$0xf]
    %v73 = vld [vmem:[#allocation8] sm:$0xf]
    %v74 = vld [vmem:[#allocation8 + $0x4] sm:$0xf]
    %v75 = vld [vmem:[#allocation8 + $0x8] sm:$0xf]
    %v76 = vld [vmem:[#allocation8 + $0xc] sm:$0xf]
    %v77 = vld [vmem:[%s3] sm:$0x1]
    %v79 = vlaneseq
    %v80 = vshrl.u32 %v79, 7
    %v81 = vsub.s32 0, %v80
    %v82 = vrot.slane %v77, %v81
    %v84 = vld [vmem:[%s4] sm:$0x1]
    %v86 = vlaneseq
    %v87 = vshrl.u32 %v86, 7
    %v88 = vsub.s32 0, %v87
    %v89 = vrot.slane %v84, %v88
    %v90 = vld [vmem:[#allocation2] sm:$0xff]
    %v91 = vpack.c.bf16 %v90, %v90
    %v92 = vld [vmem:[#allocation3] sm:$0xf]
    %v97 = vunpack.c.l.b16 %v69
    %v98 = vunpack.c.l.b16 %v70
    %v99 = vunpack.c.l.b16 %v71
    %v100 = vunpack.c.l.b16 %v72
    %v101 = vpack.c.b16 %v98, %v97
    %v102 = vpack.c.b16 %v100, %v99
    %vm105 = vcmask 261120
    %v107 = vsel %vm105, %v92, 0
    %109 = vmatprep.subr.bf16.mxu0 0
    %110 = vmatpush1.bf16.msra.mxu0 0
    %111 = vmatprep.subr.bf16.mxu0 0
    %112 = vmatpush1.bf16.msra.mxu0 0
    %113 = vmatprep.subr.bf16.mxu0 0
    %114 = vmatpush1.bf16.msra.mxu0 0
    %115 = vmatprep.subr.bf16.mxu0 0
    %116 = vmatpush1.bf16.msra.mxu0 0
    %117 = vmatprep.subr.bf16.mxu0 0
    %118 = vmatpush1.bf16.msra.mxu0 0
    %119 = vmatprep.subr.bf16.mxu0 0
    %120 = vmatpush1.bf16.msra.mxu0 0
    %121 = vmatprep.subr.bf16.mxu0 0
    %122 = vmatpush1.bf16.msra.mxu0 %v102
    %123 = vmatprep.subr.bf16.mxu0 0
    %124 = vmatpush1.bf16.msra.mxu0 %v101
    %125 = vmatprep.subr.bf16.mxu0 0
    %126 = vmatpush2.bf16.msra.mxu0 0
    %127 = vmatprep.subr.bf16.mxu0 0
    %128 = vmatpush2.bf16.msra.mxu0 0
    %129 = vmatprep.subr.bf16.mxu0 0
    %130 = vmatpush2.bf16.msra.mxu0 0
    %131 = vmatprep.subr.bf16.mxu0 0
    %132 = vmatpush2.bf16.msra.mxu0 0
    %133 = vmatprep.subr.bf16.mxu0 0
    %134 = vmatpush2.bf16.msra.mxu0 0
    %135 = vmatprep.subr.bf16.mxu0 0
    %136 = vmatpush2.bf16.msra.mxu0 0
    %137 = vmatprep.subr.bf16.mxu0 0
    %138 = vmatpush2.bf16.msra.mxu0 0
    %139 = vmatprep.subr.bf16.mxu0 0
    %140 = vmatpush2.bf16.msra.mxu0 0
    %141 = vmatprep.mubr.bf16.mxu0 0
    %142 = vmatmul.mubr.bf16.gmra.mxu0 %v107
    %v143 = vpop.f32.mrf.mxu0
    %v144 = vadd.f32 %v82, %v143
    %v145 = vpop.f32.mrf.mxu0
    %v146 = vpop.f32.mrf.mxu0
    %v147 = vpop.f32.mrf.mxu0
    %148 = vdwg.mxu0
    %v153 = vunpack.c.l.b16 %v73
    %v154 = vunpack.c.l.b16 %v74
    %v155 = vunpack.c.l.b16 %v75
    %v156 = vunpack.c.l.b16 %v76
    %v157 = vpack.c.b16 %v154, %v153
    %v158 = vpack.c.b16 %v156, %v155
    %v162 = vsel %vm105, %v91, 0
    %164 = vmatprep.subr.bf16.mxu0 0
    %165 = vmatpush1.bf16.msra.mxu0 0
    %166 = vmatprep.subr.bf16.mxu0 0
    %167 = vmatpush1.bf16.msra.mxu0 0
    %168 = vmatprep.subr.bf16.mxu0 0
    %169 = vmatpush1.bf16.msra.mxu0 0
    %170 = vmatprep.subr.bf16.mxu0 0
    %171 = vmatpush1.bf16.msra.mxu0 0
    %172 = vmatprep.subr.bf16.mxu0 0
    %173 = vmatpush1.bf16.msra.mxu0 0
    %174 = vmatprep.subr.bf16.mxu0 0
    %175 = vmatpush1.bf16.msra.mxu0 0
    %176 = vmatprep.subr.bf16.mxu0 0
    %177 = vmatpush1.bf16.msra.mxu0 %v158
    %178 = vmatprep.subr.bf16.mxu0 0
    %179 = vmatpush1.bf16.msra.mxu0 %v157
    %180 = vmatprep.subr.bf16.mxu0 0
    %181 = vmatpush2.bf16.msra.mxu0 0
    %182 = vmatprep.subr.bf16.mxu0 0
    %183 = vmatpush2.bf16.msra.mxu0 0
    %184 = vmatprep.subr.bf16.mxu0 0
    %185 = vmatpush2.bf16.msra.mxu0 0
    %186 = vmatprep.subr.bf16.mxu0 0
    %187 = vmatpush2.bf16.msra.mxu0 0
    %188 = vmatprep.subr.bf16.mxu0 0
    %189 = vmatpush2.bf16.msra.mxu0 0
    %190 = vmatprep.subr.bf16.mxu0 0
    %191 = vmatpush2.bf16.msra.mxu0 0
    %192 = vmatprep.subr.bf16.mxu0 0
    %193 = vmatpush2.bf16.msra.mxu0 0
    %194 = vmatprep.subr.bf16.mxu0 0
    %195 = vmatpush2.bf16.msra.mxu0 0
    %196 = vmatprep.mubr.bf16.mxu0 0
    %197 = vmatmul.mubr.bf16.gmra.mxu0 %v162
    %v198 = vpop.f32.mrf.mxu0
    %v199 = vadd.f32 0.0, %v198
    %v200 = vpop.f32.mrf.mxu0
    %v201 = vpop.f32.mrf.mxu0
    %v202 = vpop.f32.mrf.mxu0
    %203 = vdwg.mxu0
    %v204 = vadd.f32 %v144, %v199
    %v205 = vxor.u32 %v204, 2147483648
    %v206 = vmul.f32 %v205, 1.442695
    %v207 = vpow.pop %v206
    %v208 = vadd.f32 %v207, 1.0
    %v209 = vrcp.pop %v208
    %v210 = vmul.f32 1.0, %v209
    %211 = vrot.lane.b32.xlu0 %v89, 64
    %v212 = vpop.permute.xlu0 %211
    %v214 = vadd.f32 %v199, %v212
    %216 = vrot.lane.b32.xlu0 %v214, 64
    %v217 = vpop.permute.xlu0 %216
    %v219 = vmul.f32 %v210, %v217
    %221 = vrot.lane.b32.xlu0 %v219, 64
    %v222 = vpop.permute.xlu0 %221
    %v224 = vadd.f32 %v144, %v222
    %v225 = vtanh.pop %v224
    %v226 = vsub.f32 1.0, %v210
    %228 = vrot.lane.b32.xlu0 %v225, 96
    %v229 = vpop.permute.xlu0 %228
    %v231 = vmul.f32 %v226, %v229
    %233 = vrot.lane.b32.xlu0 %v90, 32
    %v234 = vpop.permute.xlu0 %233
    %v236 = vmul.f32 %v210, %v234
    %v237 = vadd.f32 %v231, %v236
    %v238 = vpack.c.bf16 %v237, %v237
    %v240 = vunpack.c.l.b16 %v238
    %v241 = vpack.c.b16 %v240, %v240
    %242 = vrot.lane.b32.xlu0 %v241, 96
    %v243 = vpop.permute.xlu0 %242
    %vm245 = vcmask 257024
    %246 = vst.msk [vmem:[#allocation9] sm:$0xf] %vm245, %v243
    %s247 = scalar_lea.vmem [#allocation3], 4
    %v248 = vld [vmem:[%s247] sm:$0xf]
    %v250 = vsel %vm105, %v248, 0
    %252 = vmatprep.subr.bf16.mxu0 0
    %253 = vmatpush1.bf16.msra.mxu0 0
    %254 = vmatprep.subr.bf16.mxu0 0
    %255 = vmatpush1.bf16.msra.mxu0 0
    %256 = vmatprep.subr.bf16.mxu0 0
    %257 = vmatpush1.bf16.msra.mxu0 0
    %258 = vmatprep.subr.bf16.mxu0 0
    %259 = vmatpush1.bf16.msra.mxu0 0
    %260 = vmatprep.subr.bf16.mxu0 0
    %261 = vmatpush1.bf16.msra.mxu0 0
    %262 = vmatprep.subr.bf16.mxu0 0
    %263 = vmatpush1.bf16.msra.mxu0 0
    %264 = vmatprep.subr.bf16.mxu0 0
    %265 = vmatpush1.bf16.msra.mxu0 %v102
    %266 = vmatprep.subr.bf16.mxu0 0
    %267 = vmatpush1.bf16.msra.mxu0 %v101
    %268 = vmatprep.subr.bf16.mxu0 0
    %269 = vmatpush2.bf16.msra.mxu0 0
    %270 = vmatprep.subr.bf16.mxu0 0
    %271 = vmatpush2.bf16.msra.mxu0 0
    %272 = vmatprep.subr.bf16.mxu0 0
    %273 = vmatpush2.bf16.msra.mxu0 0
    %274 = vmatprep.subr.bf16.mxu0 0
    %275 = vmatpush2.bf16.msra.mxu0 0
    %276 = vmatprep.subr.bf16.mxu0 0
    %277 = vmatpush2.bf16.msra.mxu0 0
    %278 = vmatprep.subr.bf16.mxu0 0
    %279 = vmatpush2.bf16.msra.mxu0 0
    %280 = vmatprep.subr.bf16.mxu0 0
    %281 = vmatpush2.bf16.msra.mxu0 0
    %282 = vmatprep.subr.bf16.mxu0 0
    %283 = vmatpush2.bf16.msra.mxu0 0
    %284 = vmatprep.mubr.bf16.mxu0 0
    %285 = vmatmul.mubr.bf16.gmra.mxu0 %v250
    %v286 = vpop.f32.mrf.mxu0
    %v287 = vadd.f32 %v82, %v286
    %v288 = vpop.f32.mrf.mxu0
    %v289 = vpop.f32.mrf.mxu0
    %v290 = vpop.f32.mrf.mxu0
    %291 = vdwg.mxu0
    %292 = vrot.lane.b32.xlu0 %v238, 96
    %v293 = vpop.permute.xlu0 %292
    %v295 = vsel %vm105, %v293, 0
    %297 = vmatprep.subr.bf16.mxu0 0
    %298 = vmatpush1.bf16.msra.mxu0 0
    %299 = vmatprep.subr.bf16.mxu0 0
    %300 = vmatpush1.bf16.msra.mxu0 0
    %301 = vmatprep.subr.bf16.mxu0 0
    %302 = vmatpush1.bf16.msra.mxu0 0
    %303 = vmatprep.subr.bf16.mxu0 0
    %304 = vmatpush1.bf16.msra.mxu0 0
    %305 = vmatprep.subr.bf16.mxu0 0
    %306 = vmatpush1.bf16.msra.mxu0 0
    %307 = vmatprep.subr.bf16.mxu0 0
    %308 = vmatpush1.bf16.msra.mxu0 0
    %309 = vmatprep.subr.bf16.mxu0 0
    %310 = vmatpush1.bf16.msra.mxu0 %v158
    %311 = vmatprep.subr.bf16.mxu0 0
    %312 = vmatpush1.bf16.msra.mxu0 %v157
    %313 = vmatprep.subr.bf16.mxu0 0
    %314 = vmatpush2.bf16.msra.mxu0 0
    %315 = vmatprep.subr.bf16.mxu0 0
    %316 = vmatpush2.bf16.msra.mxu0 0
    %317 = vmatprep.subr.bf16.mxu0 0
    %318 = vmatpush2.bf16.msra.mxu0 0
    %319 = vmatprep.subr.bf16.mxu0 0
    %320 = vmatpush2.bf16.msra.mxu0 0
    %321 = vmatprep.subr.bf16.mxu0 0
    %322 = vmatpush2.bf16.msra.mxu0 0
    %323 = vmatprep.subr.bf16.mxu0 0
    %324 = vmatpush2.bf16.msra.mxu0 0
    %325 = vmatprep.subr.bf16.mxu0 0
    %326 = vmatpush2.bf16.msra.mxu0 0
    %327 = vmatprep.subr.bf16.mxu0 0
    %328 = vmatpush2.bf16.msra.mxu0 0
    %329 = vmatprep.mubr.bf16.mxu0 0
    %330 = vmatmul.mubr.bf16.gmra.mxu0 %v295
    %v331 = vpop.f32.mrf.mxu0
    %v332 = vadd.f32 0.0, %v331
    %v333 = vpop.f32.mrf.mxu0
    %v334 = vpop.f32.mrf.mxu0
    %v335 = vpop.f32.mrf.mxu0
    %336 = vdwg.mxu0
    %v337 = vadd.f32 %v287, %v332
    %v338 = vxor.u32 %v337, 2147483648
    %v339 = vmul.f32 %v338, 1.442695
    %v340 = vpow.pop %v339
    %v341 = vadd.f32 %v340, 1.0
    %v342 = vrcp.pop %v341
    %v343 = vmul.f32 1.0, %v342
    %v344 = vadd.f32 %v332, %v212
    %346 = vrot.lane.b32.xlu0 %v344, 64
    %v347 = vpop.permute.xlu0 %346
    %v349 = vmul.f32 %v343, %v347
    %351 = vrot.lane.b32.xlu0 %v349, 64
    %v352 = vpop.permute.xlu0 %351
    %v354 = vadd.f32 %v287, %v352
    %v355 = vtanh.pop %v354
    %v356 = vsub.f32 1.0, %v343
    %358 = vrot.lane.b32.xlu0 %v355, 96
    %v359 = vpop.permute.xlu0 %358
    %v361 = vmul.f32 %v356, %v359
    %v362 = vmul.f32 %v343, %v237
    %v363 = vadd.f32 %v361, %v362
    %v364 = vpack.c.bf16 %v363, %v363
    %v366 = vunpack.c.l.b16 %v364
    %v367 = vpack.c.b16 %v366, %v366
    %368 = vrot.lane.b32.xlu0 %v367, 96
    %v369 = vpop.permute.xlu0 %368
    %s371 = scalar_lea.vmem [#allocation9], 4
    %372 = vst.msk [vmem:[%s371] sm:$0xf] %vm245, %v369
    %s373 = scalar_lea.vmem [#allocation3], 8
    %v374 = vld [vmem:[%s373] sm:$0xf]
    %v376 = vsel %vm105, %v374, 0
    %378 = vmatprep.subr.bf16.mxu0 0
    %379 = vmatpush1.bf16.msra.mxu0 0
    %380 = vmatprep.subr.bf16.mxu0 0
    %381 = vmatpush1.bf16.msra.mxu0 0
    %382 = vmatprep.subr.bf16.mxu0 0
    %383 = vmatpush1.bf16.msra.mxu0 0
    %384 = vmatprep.subr.bf16.mxu0 0
    %385 = vmatpush1.bf16.msra.mxu0 0
    %386 = vmatprep.subr.bf16.mxu0 0
    %387 = vmatpush1.bf16.msra.mxu0 0
    %388 = vmatprep.subr.bf16.mxu0 0
    %389 = vmatpush1.bf16.msra.mxu0 0
    %390 = vmatprep.subr.bf16.mxu0 0
    %391 = vmatpush1.bf16.msra.mxu0 %v102
    %392 = vmatprep.subr.bf16.mxu0 0
    %393 = vmatpush1.bf16.msra.mxu0 %v101
    %394 = vmatprep.subr.bf16.mxu0 0
    %395 = vmatpush2.bf16.msra.mxu0 0
    %396 = vmatprep.subr.bf16.mxu0 0
    %397 = vmatpush2.bf16.msra.mxu0 0
    %398 = vmatprep.subr.bf16.mxu0 0
    %399 = vmatpush2.bf16.msra.mxu0 0
    %400 = vmatprep.subr.bf16.mxu0 0
    %401 = vmatpush2.bf16.msra.mxu0 0
    %402 = vmatprep.subr.bf16.mxu0 0
    %403 = vmatpush2.bf16.msra.mxu0 0
    %404 = vmatprep.subr.bf16.mxu0 0
    %405 = vmatpush2.bf16.msra.mxu0 0
    %406 = vmatprep.subr.bf16.mxu0 0
    %407 = vmatpush2.bf16.msra.mxu0 0
    %408 = vmatprep.subr.bf16.mxu0 0
    %409 = vmatpush2.bf16.msra.mxu0 0
    %410 = vmatprep.mubr.bf16.mxu0 0
    %411 = vmatmul.mubr.bf16.gmra.mxu0 %v376
    %v412 = vpop.f32.mrf.mxu0
    %v413 = vadd.f32 %v82, %v412
    %v414 = vpop.f32.mrf.mxu0
    %v415 = vpop.f32.mrf.mxu0
    %v416 = vpop.f32.mrf.mxu0
    %417 = vdwg.mxu0
    %418 = vrot.lane.b32.xlu0 %v364, 96
    %v419 = vpop.permute.xlu0 %418
    %v421 = vsel %vm105, %v419, 0
    %423 = vmatprep.subr.bf16.mxu0 0
    %424 = vmatpush1.bf16.msra.mxu0 0
    %425 = vmatprep.subr.bf16.mxu0 0
    %426 = vmatpush1.bf16.msra.mxu0 0
    %427 = vmatprep.subr.bf16.mxu0 0
    %428 = vmatpush1.bf16.msra.mxu0 0
    %429 = vmatprep.subr.bf16.mxu0 0
    %430 = vmatpush1.bf16.msra.mxu0 0
    %431 = vmatprep.subr.bf16.mxu0 0
    %432 = vmatpush1.bf16.msra.mxu0 0
    %433 = vmatprep.subr.bf16.mxu0 0
    %434 = vmatpush1.bf16.msra.mxu0 0
    %435 = vmatprep.subr.bf16.mxu0 0
    %436 = vmatpush1.bf16.msra.mxu0 %v158
    %437 = vmatprep.subr.bf16.mxu0 0
    %438 = vmatpush1.bf16.msra.mxu0 %v157
    %439 = vmatprep.subr.bf16.mxu0 0
    %440 = vmatpush2.bf16.msra.mxu0 0
    %441 = vmatprep.subr.bf16.mxu0 0
    %442 = vmatpush2.bf16.msra.mxu0 0
    %443 = vmatprep.subr.bf16.mxu0 0
    %444 = vmatpush2.bf16.msra.mxu0 0
    %445 = vmatprep.subr.bf16.mxu0 0
    %446 = vmatpush2.bf16.msra.mxu0 0
    %447 = vmatprep.subr.bf16.mxu0 0
    %448 = vmatpush2.bf16.msra.mxu0 0
    %449 = vmatprep.subr.bf16.mxu0 0
    %450 = vmatpush2.bf16.msra.mxu0 0
    %451 = vmatprep.subr.bf16.mxu0 0
    %452 = vmatpush2.bf16.msra.mxu0 0
    %453 = vmatprep.subr.bf16.mxu0 0
    %454 = vmatpush2.bf16.msra.mxu0 0
    %455 = vmatprep.mubr.bf16.mxu0 0
    %456 = vmatmul.mubr.bf16.gmra.mxu0 %v421
    %v457 = vpop.f32.mrf.mxu0
    %v458 = vadd.f32 0.0, %v457
    %v459 = vpop.f32.mrf.mxu0
    %v460 = vpop.f32.mrf.mxu0
    %v461 = vpop.f32.mrf.mxu0
    %462 = vdwg.mxu0
    %v463 = vadd.f32 %v413, %v458
    %v464 = vxor.u32 %v463, 2147483648
    %v465 = vmul.f32 %v464, 1.442695
    %v466 = vpow.pop %v465
    %v467 = vadd.f32 %v466, 1.0
    %v468 = vrcp.pop %v467
    %v469 = vmul.f32 1.0, %v468
    %v470 = vadd.f32 %v458, %v212
    %472 = vrot.lane.b32.xlu0 %v470, 64
    %v473 = vpop.permute.xlu0 %472
    %v475 = vmul.f32 %v469, %v473
    %477 = vrot.lane.b32.xlu0 %v475, 64
    %v478 = vpop.permute.xlu0 %477
    %v480 = vadd.f32 %v413, %v478
    %v481 = vtanh.pop %v480
    %v482 = vsub.f32 1.0, %v469
    %484 = vrot.lane.b32.xlu0 %v481, 96
    %v485 = vpop.permute.xlu0 %484
    %v487 = vmul.f32 %v482, %v485
    %v488 = vmul.f32 %v469, %v363
    %v489 = vadd.f32 %v487, %v488
    %v490 = vpack.c.bf16 %v489, %v489
    %v492 = vunpack.c.l.b16 %v490
    %v493 = vpack.c.b16 %v492, %v492
    %494 = vrot.lane.b32.xlu0 %v493, 96
    %v495 = vpop.permute.xlu0 %494
    %s497 = scalar_lea.vmem [#allocation9], 8
    %498 = vst.msk [vmem:[%s497] sm:$0xf] %vm245, %v495
    %s499 = scalar_lea.vmem [#allocation3], 12
    %v500 = vld [vmem:[%s499] sm:$0xf]
    %v502 = vsel %vm105, %v500, 0
    %504 = vmatprep.subr.bf16.mxu0 0
    %505 = vmatpush1.bf16.msra.mxu0 0
    %506 = vmatprep.subr.bf16.mxu0 0
    %507 = vmatpush1.bf16.msra.mxu0 0
    %508 = vmatprep.subr.bf16.mxu0 0
    %509 = vmatpush1.bf16.msra.mxu0 0
    %510 = vmatprep.subr.bf16.mxu0 0
    %511 = vmatpush1.bf16.msra.mxu0 0
    %512 = vmatprep.subr.bf16.mxu0 0
    %513 = vmatpush1.bf16.msra.mxu0 0
    %514 = vmatprep.subr.bf16.mxu0 0
    %515 = vmatpush1.bf16.msra.mxu0 0
    %516 = vmatprep.subr.bf16.mxu0 0
    %517 = vmatpush1.bf16.msra.mxu0 %v102
    %518 = vmatprep.subr.bf16.mxu0 0
    %519 = vmatpush1.bf16.msra.mxu0 %v101
    %520 = vmatprep.subr.bf16.mxu0 0
    %521 = vmatpush2.bf16.msra.mxu0 0
    %522 = vmatprep.subr.bf16.mxu0 0
    %523 = vmatpush2.bf16.msra.mxu0 0
    %524 = vmatprep.subr.bf16.mxu0 0
    %525 = vmatpush2.bf16.msra.mxu0 0
    %526 = vmatprep.subr.bf16.mxu0 0
    %527 = vmatpush2.bf16.msra.mxu0 0
    %528 = vmatprep.subr.bf16.mxu0 0
    %529 = vmatpush2.bf16.msra.mxu0 0
    %530 = vmatprep.subr.bf16.mxu0 0
    %531 = vmatpush2.bf16.msra.mxu0 0
    %532 = vmatprep.subr.bf16.mxu0 0
    %533 = vmatpush2.bf16.msra.mxu0 0
    %534 = vmatprep.subr.bf16.mxu0 0
    %535 = vmatpush2.bf16.msra.mxu0 0
    %536 = vmatprep.mubr.bf16.mxu0 0
    %537 = vmatmul.mubr.bf16.gmra.mxu0 %v502
    %v538 = vpop.f32.mrf.mxu0
    %v539 = vadd.f32 %v82, %v538
    %v540 = vpop.f32.mrf.mxu0
    %v541 = vpop.f32.mrf.mxu0
    %v542 = vpop.f32.mrf.mxu0
    %543 = vdwg.mxu0
    %544 = vrot.lane.b32.xlu0 %v490, 96
    %v545 = vpop.permute.xlu0 %544
    %v547 = vsel %vm105, %v545, 0
    %549 = vmatprep.subr.bf16.mxu0 0
    %550 = vmatpush1.bf16.msra.mxu0 0
    %551 = vmatprep.subr.bf16.mxu0 0
    %552 = vmatpush1.bf16.msra.mxu0 0
    %553 = vmatprep.subr.bf16.mxu0 0
    %554 = vmatpush1.bf16.msra.mxu0 0
    %555 = vmatprep.subr.bf16.mxu0 0
    %556 = vmatpush1.bf16.msra.mxu0 0
    %557 = vmatprep.subr.bf16.mxu0 0
    %558 = vmatpush1.bf16.msra.mxu0 0
    %559 = vmatprep.subr.bf16.mxu0 0
    %560 = vmatpush1.bf16.msra.mxu0 0
    %561 = vmatprep.subr.bf16.mxu0 0
    %562 = vmatpush1.bf16.msra.mxu0 %v158
    %563 = vmatprep.subr.bf16.mxu0 0
    %564 = vmatpush1.bf16.msra.mxu0 %v157
    %565 = vmatprep.subr.bf16.mxu0 0
    %566 = vmatpush2.bf16.msra.mxu0 0
    %567 = vmatprep.subr.bf16.mxu0 0
    %568 = vmatpush2.bf16.msra.mxu0 0
    %569 = vmatprep.subr.bf16.mxu0 0
    %570 = vmatpush2.bf16.msra.mxu0 0
    %571 = vmatprep.subr.bf16.mxu0 0
    %572 = vmatpush2.bf16.msra.mxu0 0
    %573 = vmatprep.subr.bf16.mxu0 0
    %574 = vmatpush2.bf16.msra.mxu0 0
    %575 = vmatprep.subr.bf16.mxu0 0
    %576 = vmatpush2.bf16.msra.mxu0 0
    %577 = vmatprep.subr.bf16.mxu0 0
    %578 = vmatpush2.bf16.msra.mxu0 0
    %579 = vmatprep.subr.bf16.mxu0 0
    %580 = vmatpush2.bf16.msra.mxu0 0
    %581 = vmatprep.mubr.bf16.mxu0 0
    %582 = vmatmul.mubr.bf16.gmra.mxu0 %v547
    %v583 = vpop.f32.mrf.mxu0
    %v584 = vadd.f32 0.0, %v583
    %v585 = vpop.f32.mrf.mxu0
    %v586 = vpop.f32.mrf.mxu0
    %v587 = vpop.f32.mrf.mxu0
    %588 = vdwg.mxu0
    %v589 = vadd.f32 %v539, %v584
    %v590 = vxor.u32 %v589, 2147483648
    %v591 = vmul.f32 %v590, 1.442695
    %v592 = vpow.pop %v591
    %v593 = vadd.f32 %v592, 1.0
    %v594 = vrcp.pop %v593
    %v595 = vmul.f32 1.0, %v594
    %v596 = vadd.f32 %v584, %v212
    %598 = vrot.lane.b32.xlu0 %v596, 64
    %v599 = vpop.permute.xlu0 %598
    %v601 = vmul.f32 %v595, %v599
    %603 = vrot.lane.b32.xlu0 %v601, 64
    %v604 = vpop.permute.xlu0 %603
    %v606 = vadd.f32 %v539, %v604
    %v607 = vtanh.pop %v606
    %v608 = vsub.f32 1.0, %v595
    %610 = vrot.lane.b32.xlu0 %v607, 96
    %v611 = vpop.permute.xlu0 %610
    %v613 = vmul.f32 %v608, %v611
    %v614 = vmul.f32 %v595, %v489
    %v615 = vadd.f32 %v613, %v614
    %v616 = vpack.c.bf16 %v615, %v615
    %v618 = vunpack.c.l.b16 %v616
    %v619 = vpack.c.b16 %v618, %v618
    %620 = vrot.lane.b32.xlu0 %v619, 96
    %v621 = vpop.permute.xlu0 %620
    %s623 = scalar_lea.vmem [#allocation9], 12
    %624 = vst.msk [vmem:[%s623] sm:$0xf] %vm245, %v621
    %s625 = scalar_lea.vmem [#allocation3], 16
    %v626 = vld [vmem:[%s625] sm:$0xf]
    %v628 = vsel %vm105, %v626, 0
    %630 = vmatprep.subr.bf16.mxu0 0
    %631 = vmatpush1.bf16.msra.mxu0 0
    %632 = vmatprep.subr.bf16.mxu0 0
    %633 = vmatpush1.bf16.msra.mxu0 0
    %634 = vmatprep.subr.bf16.mxu0 0
    %635 = vmatpush1.bf16.msra.mxu0 0
    %636 = vmatprep.subr.bf16.mxu0 0
    %637 = vmatpush1.bf16.msra.mxu0 0
    %638 = vmatprep.subr.bf16.mxu0 0
    %639 = vmatpush1.bf16.msra.mxu0 0
    %640 = vmatprep.subr.bf16.mxu0 0
    %641 = vmatpush1.bf16.msra.mxu0 0
    %642 = vmatprep.subr.bf16.mxu0 0
    %643 = vmatpush1.bf16.msra.mxu0 %v102
    %644 = vmatprep.subr.bf16.mxu0 0
    %645 = vmatpush1.bf16.msra.mxu0 %v101
    %646 = vmatprep.subr.bf16.mxu0 0
    %647 = vmatpush2.bf16.msra.mxu0 0
    %648 = vmatprep.subr.bf16.mxu0 0
    %649 = vmatpush2.bf16.msra.mxu0 0
    %650 = vmatprep.subr.bf16.mxu0 0
    %651 = vmatpush2.bf16.msra.mxu0 0
    %652 = vmatprep.subr.bf16.mxu0 0
    %653 = vmatpush2.bf16.msra.mxu0 0
    %654 = vmatprep.subr.bf16.mxu0 0
    %655 = vmatpush2.bf16.msra.mxu0 0
    %656 = vmatprep.subr.bf16.mxu0 0
    %657 = vmatpush2.bf16.msra.mxu0 0
    %658 = vmatprep.subr.bf16.mxu0 0
    %659 = vmatpush2.bf16.msra.mxu0 0
    %660 = vmatprep.subr.bf16.mxu0 0
    %661 = vmatpush2.bf16.msra.mxu0 0
    %662 = vmatprep.mubr.bf16.mxu0 0
    %663 = vmatmul.mubr.bf16.gmra.mxu0 %v628
    %v664 = vpop.f32.mrf.mxu0
    %v665 = vadd.f32 %v82, %v664
    %v666 = vpop.f32.mrf.mxu0
    %v667 = vpop.f32.mrf.mxu0
    %v668 = vpop.f32.mrf.mxu0
    %669 = vdwg.mxu0
    %670 = vrot.lane.b32.xlu0 %v616, 96
    %v671 = vpop.permute.xlu0 %670
    %v673 = vsel %vm105, %v671, 0
    %675 = vmatprep.subr.bf16.mxu0 0
    %676 = vmatpush1.bf16.msra.mxu0 0
    %677 = vmatprep.subr.bf16.mxu0 0
    %678 = vmatpush1.bf16.msra.mxu0 0
    %679 = vmatprep.subr.bf16.mxu0 0
    %680 = vmatpush1.bf16.msra.mxu0 0
    %681 = vmatprep.subr.bf16.mxu0 0
    %682 = vmatpush1.bf16.msra.mxu0 0
    %683 = vmatprep.subr.bf16.mxu0 0
    %684 = vmatpush1.bf16.msra.mxu0 0
    %685 = vmatprep.subr.bf16.mxu0 0
    %686 = vmatpush1.bf16.msra.mxu0 0
    %687 = vmatprep.subr.bf16.mxu0 0
    %688 = vmatpush1.bf16.msra.mxu0 %v158
    %689 = vmatprep.subr.bf16.mxu0 0
    %690 = vmatpush1.bf16.msra.mxu0 %v157
    %691 = vmatprep.subr.bf16.mxu0 0
    %692 = vmatpush2.bf16.msra.mxu0 0
    %693 = vmatprep.subr.bf16.mxu0 0
    %694 = vmatpush2.bf16.msra.mxu0 0
    %695 = vmatprep.subr.bf16.mxu0 0
    %696 = vmatpush2.bf16.msra.mxu0 0
    %697 = vmatprep.subr.bf16.mxu0 0
    %698 = vmatpush2.bf16.msra.mxu0 0
    %699 = vmatprep.subr.bf16.mxu0 0
    %700 = vmatpush2.bf16.msra.mxu0 0
    %701 = vmatprep.subr.bf16.mxu0 0
    %702 = vmatpush2.bf16.msra.mxu0 0
    %703 = vmatprep.subr.bf16.mxu0 0
    %704 = vmatpush2.bf16.msra.mxu0 0
    %705 = vmatprep.subr.bf16.mxu0 0
    %706 = vmatpush2.bf16.msra.mxu0 0
    %707 = vmatprep.mubr.bf16.mxu0 0
    %708 = vmatmul.mubr.bf16.gmra.mxu0 %v673
    %v709 = vpop.f32.mrf.mxu0
    %v710 = vadd.f32 0.0, %v709
    %v711 = vpop.f32.mrf.mxu0
    %v712 = vpop.f32.mrf.mxu0
    %v713 = vpop.f32.mrf.mxu0
    %714 = vdwg.mxu0
    %v715 = vadd.f32 %v665, %v710
    %v716 = vxor.u32 %v715, 2147483648
    %v717 = vmul.f32 %v716, 1.442695
    %v718 = vpow.pop %v717
    %v719 = vadd.f32 %v718, 1.0
    %v720 = vrcp.pop %v719
    %v721 = vmul.f32 1.0, %v720
    %v722 = vadd.f32 %v710, %v212
    %724 = vrot.lane.b32.xlu0 %v722, 64
    %v725 = vpop.permute.xlu0 %724
    %v727 = vmul.f32 %v721, %v725
    %729 = vrot.lane.b32.xlu0 %v727, 64
    %v730 = vpop.permute.xlu0 %729
    %v732 = vadd.f32 %v665, %v730
    %v733 = vtanh.pop %v732
    %v734 = vsub.f32 1.0, %v721
    %736 = vrot.lane.b32.xlu0 %v733, 96
    %v737 = vpop.permute.xlu0 %736
    %v739 = vmul.f32 %v734, %v737
    %v740 = vmul.f32 %v721, %v615
    %v741 = vadd.f32 %v739, %v740
    %v742 = vpack.c.bf16 %v741, %v741
    %v744 = vunpack.c.l.b16 %v742
    %v745 = vpack.c.b16 %v744, %v744
    %746 = vrot.lane.b32.xlu0 %v745, 96
    %v747 = vpop.permute.xlu0 %746
    %s749 = scalar_lea.vmem [#allocation9], 16
    %750 = vst.msk [vmem:[%s749] sm:$0xf] %vm245, %v747
    %s751 = scalar_lea.vmem [#allocation3], 20
    %v752 = vld [vmem:[%s751] sm:$0xf]
    %v754 = vsel %vm105, %v752, 0
    %756 = vmatprep.subr.bf16.mxu0 0
    %757 = vmatpush1.bf16.msra.mxu0 0
    %758 = vmatprep.subr.bf16.mxu0 0
    %759 = vmatpush1.bf16.msra.mxu0 0
    %760 = vmatprep.subr.bf16.mxu0 0
    %761 = vmatpush1.bf16.msra.mxu0 0
    %762 = vmatprep.subr.bf16.mxu0 0
    %763 = vmatpush1.bf16.msra.mxu0 0
    %764 = vmatprep.subr.bf16.mxu0 0
    %765 = vmatpush1.bf16.msra.mxu0 0
    %766 = vmatprep.subr.bf16.mxu0 0
    %767 = vmatpush1.bf16.msra.mxu0 0
    %768 = vmatprep.subr.bf16.mxu0 0
    %769 = vmatpush1.bf16.msra.mxu0 %v102
    %770 = vmatprep.subr.bf16.mxu0 0
    %771 = vmatpush1.bf16.msra.mxu0 %v101
    %772 = vmatprep.subr.bf16.mxu0 0
    %773 = vmatpush2.bf16.msra.mxu0 0
    %774 = vmatprep.subr.bf16.mxu0 0
    %775 = vmatpush2.bf16.msra.mxu0 0
    %776 = vmatprep.subr.bf16.mxu0 0
    %777 = vmatpush2.bf16.msra.mxu0 0
    %778 = vmatprep.subr.bf16.mxu0 0
    %779 = vmatpush2.bf16.msra.mxu0 0
    %780 = vmatprep.subr.bf16.mxu0 0
    %781 = vmatpush2.bf16.msra.mxu0 0
    %782 = vmatprep.subr.bf16.mxu0 0
    %783 = vmatpush2.bf16.msra.mxu0 0
    %784 = vmatprep.subr.bf16.mxu0 0
    %785 = vmatpush2.bf16.msra.mxu0 0
    %786 = vmatprep.subr.bf16.mxu0 0
    %787 = vmatpush2.bf16.msra.mxu0 0
    %788 = vmatprep.mubr.bf16.mxu0 0
    %789 = vmatmul.mubr.bf16.gmra.mxu0 %v754
    %v790 = vpop.f32.mrf.mxu0
    %v791 = vadd.f32 %v82, %v790
    %v792 = vpop.f32.mrf.mxu0
    %v793 = vpop.f32.mrf.mxu0
    %v794 = vpop.f32.mrf.mxu0
    %795 = vdwg.mxu0
    %796 = vrot.lane.b32.xlu0 %v742, 96
    %v797 = vpop.permute.xlu0 %796
    %v799 = vsel %vm105, %v797, 0
    %801 = vmatprep.subr.bf16.mxu0 0
    %802 = vmatpush1.bf16.msra.mxu0 0
    %803 = vmatprep.subr.bf16.mxu0 0
    %804 = vmatpush1.bf16.msra.mxu0 0
    %805 = vmatprep.subr.bf16.mxu0 0
    %806 = vmatpush1.bf16.msra.mxu0 0
    %807 = vmatprep.subr.bf16.mxu0 0
    %808 = vmatpush1.bf16.msra.mxu0 0
    %809 = vmatprep.subr.bf16.mxu0 0
    %810 = vmatpush1.bf16.msra.mxu0 0
    %811 = vmatprep.subr.bf16.mxu0 0
    %812 = vmatpush1.bf16.msra.mxu0 0
    %813 = vmatprep.subr.bf16.mxu0 0
    %814 = vmatpush1.bf16.msra.mxu0 %v158
    %815 = vmatprep.subr.bf16.mxu0 0
    %816 = vmatpush1.bf16.msra.mxu0 %v157
    %817 = vmatprep.subr.bf16.mxu0 0
    %818 = vmatpush2.bf16.msra.mxu0 0
    %819 = vmatprep.subr.bf16.mxu0 0
    %820 = vmatpush2.bf16.msra.mxu0 0
    %821 = vmatprep.subr.bf16.mxu0 0
    %822 = vmatpush2.bf16.msra.mxu0 0
    %823 = vmatprep.subr.bf16.mxu0 0
    %824 = vmatpush2.bf16.msra.mxu0 0
    %825 = vmatprep.subr.bf16.mxu0 0
    %826 = vmatpush2.bf16.msra.mxu0 0
    %827 = vmatprep.subr.bf16.mxu0 0
    %828 = vmatpush2.bf16.msra.mxu0 0
    %829 = vmatprep.subr.bf16.mxu0 0
    %830 = vmatpush2.bf16.msra.mxu0 0
    %831 = vmatprep.subr.bf16.mxu0 0
    %832 = vmatpush2.bf16.msra.mxu0 0
    %833 = vmatprep.mubr.bf16.mxu0 0
    %834 = vmatmul.mubr.bf16.gmra.mxu0 %v799
    %v835 = vpop.f32.mrf.mxu0
    %v836 = vadd.f32 0.0, %v835
    %v837 = vpop.f32.mrf.mxu0
    %v838 = vpop.f32.mrf.mxu0
    %v839 = vpop.f32.mrf.mxu0
    %840 = vdwg.mxu0
    %v841 = vadd.f32 %v791, %v836
    %v842 = vxor.u32 %v841, 2147483648
    %v843 = vmul.f32 %v842, 1.442695
    %v844 = vpow.pop %v843
    %v845 = vadd.f32 %v844, 1.0
    %v846 = vrcp.pop %v845
    %v847 = vmul.f32 1.0, %v846
    %v848 = vadd.f32 %v836, %v212
    %850 = vrot.lane.b32.xlu0 %v848, 64
    %v851 = vpop.permute.xlu0 %850
    %v853 = vmul.f32 %v847, %v851
    %855 = vrot.lane.b32.xlu0 %v853, 64
    %v856 = vpop.permute.xlu0 %855
    %v858 = vadd.f32 %v791, %v856
    %v859 = vtanh.pop %v858
    %v860 = vsub.f32 1.0, %v847
    %862 = vrot.lane.b32.xlu0 %v859, 96
    %v863 = vpop.permute.xlu0 %862
    %v865 = vmul.f32 %v860, %v863
    %v866 = vmul.f32 %v847, %v741
    %v867 = vadd.f32 %v865, %v866
    %v868 = vpack.c.bf16 %v867, %v867
    %v870 = vunpack.c.l.b16 %v868
    %v871 = vpack.c.b16 %v870, %v870
    %872 = vrot.lane.b32.xlu0 %v871, 96
    %v873 = vpop.permute.xlu0 %872
    %s875 = scalar_lea.vmem [#allocation9], 20
    %876 = vst.msk [vmem:[%s875] sm:$0xf] %vm245, %v873
    %s877 = scalar_lea.vmem [#allocation3], 24
    %v878 = vld [vmem:[%s877] sm:$0xf]
    %v880 = vsel %vm105, %v878, 0
    %882 = vmatprep.subr.bf16.mxu0 0
    %883 = vmatpush1.bf16.msra.mxu0 0
    %884 = vmatprep.subr.bf16.mxu0 0
    %885 = vmatpush1.bf16.msra.mxu0 0
    %886 = vmatprep.subr.bf16.mxu0 0
    %887 = vmatpush1.bf16.msra.mxu0 0
    %888 = vmatprep.subr.bf16.mxu0 0
    %889 = vmatpush1.bf16.msra.mxu0 0
    %890 = vmatprep.subr.bf16.mxu0 0
    %891 = vmatpush1.bf16.msra.mxu0 0
    %892 = vmatprep.subr.bf16.mxu0 0
    %893 = vmatpush1.bf16.msra.mxu0 0
    %894 = vmatprep.subr.bf16.mxu0 0
    %895 = vmatpush1.bf16.msra.mxu0 %v102
    %896 = vmatprep.subr.bf16.mxu0 0
    %897 = vmatpush1.bf16.msra.mxu0 %v101
    %898 = vmatprep.subr.bf16.mxu0 0
    %899 = vmatpush2.bf16.msra.mxu0 0
    %900 = vmatprep.subr.bf16.mxu0 0
    %901 = vmatpush2.bf16.msra.mxu0 0
    %902 = vmatprep.subr.bf16.mxu0 0
    %903 = vmatpush2.bf16.msra.mxu0 0
    %904 = vmatprep.subr.bf16.mxu0 0
    %905 = vmatpush2.bf16.msra.mxu0 0
    %906 = vmatprep.subr.bf16.mxu0 0
    %907 = vmatpush2.bf16.msra.mxu0 0
    %908 = vmatprep.subr.bf16.mxu0 0
    %909 = vmatpush2.bf16.msra.mxu0 0
    %910 = vmatprep.subr.bf16.mxu0 0
    %911 = vmatpush2.bf16.msra.mxu0 0
    %912 = vmatprep.subr.bf16.mxu0 0
    %913 = vmatpush2.bf16.msra.mxu0 0
    %914 = vmatprep.mubr.bf16.mxu0 0
    %915 = vmatmul.mubr.bf16.gmra.mxu0 %v880
    %v916 = vpop.f32.mrf.mxu0
    %v917 = vadd.f32 %v82, %v916
    %v918 = vpop.f32.mrf.mxu0
    %v919 = vpop.f32.mrf.mxu0
    %v920 = vpop.f32.mrf.mxu0
    %921 = vdwg.mxu0
    %922 = vrot.lane.b32.xlu0 %v868, 96
    %v923 = vpop.permute.xlu0 %922
    %v925 = vsel %vm105, %v923, 0
    %927 = vmatprep.subr.bf16.mxu0 0
    %928 = vmatpush1.bf16.msra.mxu0 0
    %929 = vmatprep.subr.bf16.mxu0 0
    %930 = vmatpush1.bf16.msra.mxu0 0
    %931 = vmatprep.subr.bf16.mxu0 0
    %932 = vmatpush1.bf16.msra.mxu0 0
    %933 = vmatprep.subr.bf16.mxu0 0
    %934 = vmatpush1.bf16.msra.mxu0 0
    %935 = vmatprep.subr.bf16.mxu0 0
    %936 = vmatpush1.bf16.msra.mxu0 0
    %937 = vmatprep.subr.bf16.mxu0 0
    %938 = vmatpush1.bf16.msra.mxu0 0
    %939 = vmatprep.subr.bf16.mxu0 0
    %940 = vmatpush1.bf16.msra.mxu0 %v158
    %941 = vmatprep.subr.bf16.mxu0 0
    %942 = vmatpush1.bf16.msra.mxu0 %v157
    %943 = vmatprep.subr.bf16.mxu0 0
    %944 = vmatpush2.bf16.msra.mxu0 0
    %945 = vmatprep.subr.bf16.mxu0 0
    %946 = vmatpush2.bf16.msra.mxu0 0
    %947 = vmatprep.subr.bf16.mxu0 0
    %948 = vmatpush2.bf16.msra.mxu0 0
    %949 = vmatprep.subr.bf16.mxu0 0
    %950 = vmatpush2.bf16.msra.mxu0 0
    %951 = vmatprep.subr.bf16.mxu0 0
    %952 = vmatpush2.bf16.msra.mxu0 0
    %953 = vmatprep.subr.bf16.mxu0 0
    %954 = vmatpush2.bf16.msra.mxu0 0
    %955 = vmatprep.subr.bf16.mxu0 0
    %956 = vmatpush2.bf16.msra.mxu0 0
    %957 = vmatprep.subr.bf16.mxu0 0
    %958 = vmatpush2.bf16.msra.mxu0 0
    %959 = vmatprep.mubr.bf16.mxu0 0
    %960 = vmatmul.mubr.bf16.gmra.mxu0 %v925
    %v961 = vpop.f32.mrf.mxu0
    %v962 = vadd.f32 0.0, %v961
    %v963 = vpop.f32.mrf.mxu0
    %v964 = vpop.f32.mrf.mxu0
    %v965 = vpop.f32.mrf.mxu0
    %966 = vdwg.mxu0
    %v967 = vadd.f32 %v917, %v962
    %v968 = vxor.u32 %v967, 2147483648
    %v969 = vmul.f32 %v968, 1.442695
    %v970 = vpow.pop %v969
    %v971 = vadd.f32 %v970, 1.0
    %v972 = vrcp.pop %v971
    %v973 = vmul.f32 1.0, %v972
    %v974 = vadd.f32 %v962, %v212
    %976 = vrot.lane.b32.xlu0 %v974, 64
    %v977 = vpop.permute.xlu0 %976
    %v979 = vmul.f32 %v973, %v977
    %981 = vrot.lane.b32.xlu0 %v979, 64
    %v982 = vpop.permute.xlu0 %981
    %v984 = vadd.f32 %v917, %v982
    %v985 = vtanh.pop %v984
    %v986 = vsub.f32 1.0, %v973
    %988 = vrot.lane.b32.xlu0 %v985, 96
    %v989 = vpop.permute.xlu0 %988
    %v991 = vmul.f32 %v986, %v989
    %v992 = vmul.f32 %v973, %v867
    %v993 = vadd.f32 %v991, %v992
    %v994 = vpack.c.bf16 %v993, %v993
    %v996 = vunpack.c.l.b16 %v994
    %v997 = vpack.c.b16 %v996, %v996
    %998 = vrot.lane.b32.xlu0 %v997, 96
    %v999 = vpop.permute.xlu0 %998
    %s1001 = scalar_lea.vmem [#allocation9], 24
    %1002 = vst.msk [vmem:[%s1001] sm:$0xf] %vm245, %v999
    %s1003 = scalar_lea.vmem [#allocation3], 28
    %v1004 = vld [vmem:[%s1003] sm:$0xf]
    %v1006 = vsel %vm105, %v1004, 0
    %1008 = vmatprep.subr.bf16.mxu0 0
    %1009 = vmatpush1.bf16.msra.mxu0 0
    %1010 = vmatprep.subr.bf16.mxu0 0
    %1011 = vmatpush1.bf16.msra.mxu0 0
    %1012 = vmatprep.subr.bf16.mxu0 0
    %1013 = vmatpush1.bf16.msra.mxu0 0
    %1014 = vmatprep.subr.bf16.mxu0 0
    %1015 = vmatpush1.bf16.msra.mxu0 0
    %1016 = vmatprep.subr.bf16.mxu0 0
    %1017 = vmatpush1.bf16.msra.mxu0 0
    %1018 = vmatprep.subr.bf16.mxu0 0
    %1019 = vmatpush1.bf16.msra.mxu0 0
    %1020 = vmatprep.subr.bf16.mxu0 0
    %1021 = vmatpush1.bf16.msra.mxu0 %v102
    %1022 = vmatprep.subr.bf16.mxu0 0
    %1023 = vmatpush1.bf16.msra.mxu0 %v101
    %1024 = vmatprep.subr.bf16.mxu0 0
    %1025 = vmatpush2.bf16.msra.mxu0 0
    %1026 = vmatprep.subr.bf16.mxu0 0
    %1027 = vmatpush2.bf16.msra.mxu0 0
    %1028 = vmatprep.subr.bf16.mxu0 0
    %1029 = vmatpush2.bf16.msra.mxu0 0
    %1030 = vmatprep.subr.bf16.mxu0 0
    %1031 = vmatpush2.bf16.msra.mxu0 0
    %1032 = vmatprep.subr.bf16.mxu0 0
    %1033 = vmatpush2.bf16.msra.mxu0 0
    %1034 = vmatprep.subr.bf16.mxu0 0
    %1035 = vmatpush2.bf16.msra.mxu0 0
    %1036 = vmatprep.subr.bf16.mxu0 0
    %1037 = vmatpush2.bf16.msra.mxu0 0
    %1038 = vmatprep.subr.bf16.mxu0 0
    %1039 = vmatpush2.bf16.msra.mxu0 0
    %1040 = vmatprep.mubr.bf16.mxu0 0
    %1041 = vmatmul.mubr.bf16.gmra.mxu0 %v1006
    %v1042 = vpop.f32.mrf.mxu0
    %v1043 = vadd.f32 %v82, %v1042
    %v1044 = vpop.f32.mrf.mxu0
    %v1045 = vpop.f32.mrf.mxu0
    %v1046 = vpop.f32.mrf.mxu0
    %1047 = vdwg.mxu0
    %1048 = vrot.lane.b32.xlu0 %v994, 96
    %v1049 = vpop.permute.xlu0 %1048
    %v1051 = vsel %vm105, %v1049, 0
    %1053 = vmatprep.subr.bf16.mxu0 0
    %1054 = vmatpush1.bf16.msra.mxu0 0
    %1055 = vmatprep.subr.bf16.mxu0 0
    %1056 = vmatpush1.bf16.msra.mxu0 0
    %1057 = vmatprep.subr.bf16.mxu0 0
    %1058 = vmatpush1.bf16.msra.mxu0 0
    %1059 = vmatprep.subr.bf16.mxu0 0
    %1060 = vmatpush1.bf16.msra.mxu0 0
    %1061 = vmatprep.subr.bf16.mxu0 0
    %1062 = vmatpush1.bf16.msra.mxu0 0
    %1063 = vmatprep.subr.bf16.mxu0 0
    %1064 = vmatpush1.bf16.msra.mxu0 0
    %1065 = vmatprep.subr.bf16.mxu0 0
    %1066 = vmatpush1.bf16.msra.mxu0 %v158
    %1067 = vmatprep.subr.bf16.mxu0 0
    %1068 = vmatpush1.bf16.msra.mxu0 %v157
    %1069 = vmatprep.subr.bf16.mxu0 0
    %1070 = vmatpush2.bf16.msra.mxu0 0
    %1071 = vmatprep.subr.bf16.mxu0 0
    %1072 = vmatpush2.bf16.msra.mxu0 0
    %1073 = vmatprep.subr.bf16.mxu0 0
    %1074 = vmatpush2.bf16.msra.mxu0 0
    %1075 = vmatprep.subr.bf16.mxu0 0
    %1076 = vmatpush2.bf16.msra.mxu0 0
    %1077 = vmatprep.subr.bf16.mxu0 0
    %1078 = vmatpush2.bf16.msra.mxu0 0
    %1079 = vmatprep.subr.bf16.mxu0 0
    %1080 = vmatpush2.bf16.msra.mxu0 0
    %1081 = vmatprep.subr.bf16.mxu0 0
    %1082 = vmatpush2.bf16.msra.mxu0 0
    %1083 = vmatprep.subr.bf16.mxu0 0
    %1084 = vmatpush2.bf16.msra.mxu0 0
    %1085 = vmatprep.mubr.bf16.mxu0 0
    %1086 = vmatmul.mubr.bf16.gmra.mxu0 %v1051
    %v1087 = vpop.f32.mrf.mxu0
    %v1088 = vadd.f32 0.0, %v1087
    %v1089 = vpop.f32.mrf.mxu0
    %v1090 = vpop.f32.mrf.mxu0
    %v1091 = vpop.f32.mrf.mxu0
    %1092 = vdwg.mxu0
    %v1093 = vadd.f32 %v1043, %v1088
    %v1094 = vxor.u32 %v1093, 2147483648
    %v1095 = vmul.f32 %v1094, 1.442695
    %v1096 = vpow.pop %v1095
    %v1097 = vadd.f32 %v1096, 1.0
    %v1098 = vrcp.pop %v1097
    %v1099 = vmul.f32 1.0, %v1098
    %v1100 = vadd.f32 %v1088, %v212
    %1102 = vrot.lane.b32.xlu0 %v1100, 64
    %v1103 = vpop.permute.xlu0 %1102
    %v1105 = vmul.f32 %v1099, %v1103
    %1107 = vrot.lane.b32.xlu0 %v1105, 64
    %v1108 = vpop.permute.xlu0 %1107
    %v1110 = vadd.f32 %v1043, %v1108
    %v1111 = vtanh.pop %v1110
    %v1112 = vsub.f32 1.0, %v1099
    %1114 = vrot.lane.b32.xlu0 %v1111, 96
    %v1115 = vpop.permute.xlu0 %1114
    %v1117 = vmul.f32 %v1112, %v1115
    %v1118 = vmul.f32 %v1099, %v993
    %v1119 = vadd.f32 %v1117, %v1118
    %v1120 = vpack.c.bf16 %v1119, %v1119
    %v1122 = vunpack.c.l.b16 %v1120
    %v1123 = vpack.c.b16 %v1122, %v1122
    %1124 = vrot.lane.b32.xlu0 %v1123, 96
    %v1125 = vpop.permute.xlu0 %1124
    %s1127 = scalar_lea.vmem [#allocation9], 28
    %1128 = vst.msk [vmem:[%s1127] sm:$0xf] %vm245, %v1125
    %1130 = vrot.lane.b32.xlu0 %v1119, 96
    %v1131 = vpop.permute.xlu0 %1130
    %1133 = vst.msk [vmem:[#allocation2] sm:$0xff] %vm105, %v1131
    // Predicated region
    $region38: #{tpu_custom_call.1} parent=1 // pred_check
      _
    $region39: #{tpu_custom_call.1} parent=1 // pred_check_branch
      %1135 = sbr.rel (0) target = $region41
    $region40: #{tpu_custom_call.1} parent=1 // pred_region
      %s1137 = ssub.s32 512, 512
      %1138 = vsyncadd [#allocation5], %s1137
      %s1139 = sshll.u32 [#allocation9], 4
      %s1140 = int_to_ptr.vmem [resolvable:$true] %s1139
      %1145 = dma.vmem_to_hbm [thread:$0]  %s1140, 512, %s5, [#allocation5], 64, 64, 4
    $region41: #{tpu_custom_call.1} parent=1 // pred_fallthru
      _
    // Predicated region
    $region42: #{tpu_custom_call.1} parent=1 // pred_check
      _
    $region43: #{tpu_custom_call.1} parent=1 // pred_check_branch
      %1147 = sbr.rel (0) target = $region45
    $region44: #{tpu_custom_call.1} parent=1 // pred_region
      %1148 = dma.done [#allocation5], 512
    $region45: #{tpu_custom_call.1} parent=1 // pred_fallthru
      _
    %1149 = vsyncpa [#allocation4], 1
    %1150 = vsyncpa [#allocation7], 1
    %1151 = vsyncpa [#allocation5], 1

</llo_original>
